<compile_context>
chip_gen: v7x
topology: tpu7x:2x2x1
jax: 0.10.0
libtpu: 0.0.40
codegen_flags: <defaults>
</compile_context>

<pallas_src>
import functools

import jax
import jax.numpy as jnp
from jax.experimental import pallas as pl
from jax.experimental.pallas import tpu as pltpu


def _ru(n, m):
    return ((n + m - 1) // m) * m


# --------------------------------------------------------------------------- kernel
def decoder_attn_kernel(xh_ref, c_ref, enc_ref,
                        w_xh_ref, w_e_ref, w_out_ref,
                        b_xh_ref, b_e_ref, b_misc_ref,
                        out_ref, *, GH, GA, GF, GS, S):
    """One decode step.  All lane offsets are multiples of 128 (GH/GA/GF/GS are the
    128-rounded widths of H / attention_hidden / input_feature_len / S), so every
    slice below is a vreg-aligned read and the final store is a single unmasked slab.

      xh_ref   : (B, GF+GH)        [ x | h ]                    (zero-padded lanes)
      c_ref    : (B, GH)
      enc_ref  : (B*S, H)          pre-flattened encoder outputs
      w_xh_ref : (GF+GH, 4*GH+GA)  [ i | f | g | o | hid_term ]  column groups
      w_e_ref  : (H, 2*GA)         [ enc_p | enc_term ]          column groups
      w_out_ref: (GH+GA, GF)       [ h_new ; context ]           row groups
      out_ref  : (B, GF+2*GH+GS)   [ pred | h_new | c_new | attn_weights ]
    """
    f32 = jnp.float32
    B = c_ref.shape[0]
    mxu_dtype = w_xh_ref.dtype

    # ---- one fused [x|h] MXU pass: LSTM gates + attention hidden term ----
    gates_all = (jnp.dot(xh_ref[...], w_xh_ref[...], preferred_element_type=f32)
                 + b_xh_ref[...])                                   # (B, 4*GH+GA) f32
    i_g = jax.nn.sigmoid(gates_all[:, 0 * GH:1 * GH])
    f_g = jax.nn.sigmoid(gates_all[:, 1 * GH:2 * GH])
    g_g = jnp.tanh(gates_all[:, 2 * GH:3 * GH])
    o_g = jax.nn.sigmoid(gates_all[:, 3 * GH:4 * GH])
    hid_term = gates_all[:, 4 * GH:4 * GH + GA]                     # (B, GA)

    c_new = f_g * c_ref[...] + i_g * g_g                            # (B, GH)
    h_new = o_g * jnp.tanh(c_new)                                   # (B, GH)

    # ---- one fused encoder-side MXU pass on the pre-flattened (B*S, H) input ----
    ee = (jnp.dot(enc_ref[...], w_e_ref[...], preferred_element_type=f32)
          + b_e_ref[...])                                           # (B*S, 2*GA) f32
    enc_p = ee[:, :GA].reshape(B, S, GA)                            # encoder_projection(enc)
    enc_term = ee[:, GA:2 * GA].reshape(B, S, GA)                   # enc_p @ Wae (pre-composed)

    ba = b_misc_ref[:, :GA]
    v = b_misc_ref[:, GA:2 * GA]
    b_out = b_misc_ref[:, 2 * GA:2 * GA + GF]

    # ---- additive attention + softmax over S (padding lanes are exact zeros) ----
    energy = jnp.tanh(hid_term[:, None, :] + enc_term + ba)         # (B, S, GA)
    scores = jnp.sum(energy * v, axis=-1)                           # (B, S)
    scores = scores - jnp.max(scores, axis=-1, keepdims=True)
    e = jnp.exp(scores)
    attw = e * pl.reciprocal(jnp.sum(e, axis=-1, keepdims=True), approx=True)   # (B, S)

    # TODO(synk): at large S tile this on a grid axis and lower the contraction onto
    #             the MXU with an online softmax; at S=8 the VPU/XLU reduce is free.
    context = jnp.sum(attw[:, :, None] * enc_p, axis=1)             # (B, GA)

    # ---- output head: pred = [h_new | context] @ W_out + b_out (single MXU pass) ----
    hc = jnp.concatenate([h_new, context], axis=1).astype(mxu_dtype)  # (B, GH+GA)
    pred = jnp.dot(hc, w_out_ref[...], preferred_element_type=f32) + b_out        # (B, GF)

    # ---- single lane-dense store: every section starts on a 128-lane boundary ----
    if GS > S:
        attw = jnp.concatenate([attw, jnp.zeros((B, GS - S), f32)], axis=1)
    out_ref[...] = jnp.concatenate([pred, h_new, c_new, attw], axis=1)


# --------------------------------------------------------------------- build-time prep
def make_params(key, input_feature_len, hidden_size):
    """Deterministic synthetic parameters, torch-convention shapes."""
    A = hidden_size // 8          # attention_hidden_size (scale_factor = 8)
    F, H = input_feature_len, hidden_size
    ks = jax.random.split(key, 12)

    def init(k, shape, scale=0.1):
        return (jax.random.normal(k, shape, jnp.float32) * scale).astype(jnp.float32)

    return dict(
        enc_proj_w=init(ks[0], (A, H)), enc_proj_b=init(ks[1], (A,)),
        hid_proj_w=init(ks[2], (A, H)), hid_proj_b=init(ks[3], (A,)),
        attn_w=init(ks[4], (A, 2 * A)), attn_b=init(ks[5], (A,)),
        attn_v=jax.random.uniform(ks[6], (1, A), jnp.float32),
        w_ih=init(ks[7], (4 * H, F)), w_hh=init(ks[8], (4 * H, H)),
        b_ih=init(ks[9], (4 * H,)), b_hh=init(ks[10], (4 * H,)),
        lin_w=init(ks[11], (F, H + A)), lin_b=jnp.zeros((F,), jnp.float32),
    )


def prepare_weights(params, mxu_dtype=jnp.bfloat16):
    """One-time repackaging into fused, 128-lane-aligned kernel operands.

    Never call this in the per-token decode loop.  MXU operands are stored bf16
    (halves weight DMA; native MXU dtype on v6e/v7x); biases stay f32 so every
    elementwise op stays f32 (v5e has no bf16 VPU/EUP).
    """
    A, H = params['hid_proj_w'].shape
    F = params['w_ih'].shape[1]
    GH, GA, GF = _ru(H, 128), _ru(A, 128), _ru(F, 128)

    wpe = params['enc_proj_w'].T          # (H, A) encoder projection
    bpe = params['enc_proj_b']
    wph = params['hid_proj_w'].T          # (H, A) hidden projection
    bph = params['hid_proj_b']
    wah = params['attn_w'][:, :A].T       # (A, A) attn weight, hidden half
    wae = params['attn_w'][:, A:].T       # (A, A) attn weight, encoder half

    # Pre-compose attention projections (exact up to fp reassociation).
    W1, b1 = wpe @ wae, bpe @ wae         # enc -> enc_term
    W2, b2 = wph @ wah, bph @ wah         # h   -> hid_term

    w_x = params['w_ih'].T                # (F, 4H), gate column order [i|f|g|o]
    w_hh = params['w_hh'].T               # (H, 4H)
    b_g = params['b_ih'] + params['b_hh']

    # Fused [x|h] weight: each gate and the attention hidden term get their own
    # 128-aligned lane group so in-kernel slices never cross a vreg boundary.
    w_xh = jnp.zeros((GF + GH, 4 * GH + GA), jnp.float32)
    b_xh = jnp.zeros((1, 4 * GH + GA), jnp.float32)
    for k in range(4):
        w_xh = w_xh.at[:F, k * GH:k * GH + H].set(w_x[:, k * H:(k + 1) * H])
        w_xh = w_xh.at[GF:GF + H, k * GH:k * GH + H].set(w_hh[:, k * H:(k + 1) * H])
        b_xh = b_xh.at[0, k * GH:k * GH + H].set(b_g[k * H:(k + 1) * H])
    w_xh = w_xh.at[GF:GF + H, 4 * GH:4 * GH + A].set(W2)
    b_xh = b_xh.at[0, 4 * GH:4 * GH + A].set(b2)

    # Fused encoder-side weight: [enc_p | enc_term] column groups.
    w_e = jnp.zeros((H, 2 * GA), jnp.float32).at[:, :A].set(wpe).at[:, GA:GA + A].set(W1)
    b_e = jnp.zeros((1, 2 * GA), jnp.float32).at[0, :A].set(bpe).at[0, GA:GA + A].set(b1)

    # Output head: [h_new ; context] row groups.
    lw = params['lin_w'].T                # (H + A, F)
    w_out = (jnp.zeros((GH + GA, GF), jnp.float32)
             .at[:H, :F].set(lw[:H]).at[GH:GH + A, :F].set(lw[H:]))

    # Misc small vectors: [attn bias | v | output bias] lane groups.
    b_misc = (jnp.zeros((1, 2 * GA + GF), jnp.float32)
              .at[0, :A].set(params['attn_b'])
              .at[0, GA:GA + A].set(params['attn_v'][0])
              .at[0, 2 * GA:2 * GA + F].set(params['lin_b']))

    return dict(
        w_xh=w_xh.astype(mxu_dtype), w_e=w_e.astype(mxu_dtype), w_out=w_out.astype(mxu_dtype),
        b_xh=b_xh, b_e=b_e, b_misc=b_misc,
    )


# ------------------------------------------------------------------------- wrapper
@jax.jit
def decoder_with_attention(packed, input_seq, h, c, encoder_outputs):
    """Pallas-backed forward. h, c: (1, B, H). Returns (pred, h, c, attn_weights)."""
    B, F = input_seq.shape
    _, S, H = encoder_outputs.shape

    GA = packed['w_e'].shape[1] // 2
    GH = packed['w_out'].shape[0] - GA
    GF = packed['w_out'].shape[1]
    GS = _ru(S, 128)
    BP = max(8, _ru(B, 8))                # fill sublanes (B=2 would leave vregs 2/8 used)
    mxu_dtype = packed['w_xh'].dtype

    # Wrapper-side layout plumbing (zero-padded lanes/rows, flatten encoder once).
    xh = (jnp.zeros((BP, GF + GH), jnp.float32)
          .at[:B, :F].set(input_seq)
          .at[:B, GF:GF + H].set(h[0])).astype(mxu_dtype)
    c_pad = jnp.zeros((BP, GH), jnp.float32).at[:B, :H].set(c[0])
    enc2 = (jnp.zeros((BP, S, H), jnp.float32).at[:B].set(encoder_outputs)
            .reshape(BP * S, H).astype(mxu_dtype))

    out_w = GF + 2 * GH + GS
    vmem = pl.BlockSpec(memory_space=pltpu.MemorySpace.VMEM)
    kernel = functools.partial(decoder_attn_kernel, GH=GH, GA=GA, GF=GF, GS=GS, S=S)

    out = pl.pallas_call(
        kernel,
        out_shape=jax.ShapeDtypeStruct((BP, out_w), jnp.float32),
        in_specs=[vmem] * 9,
        out_specs=vmem,
    )(xh, c_pad, enc2,
      packed['w_xh'], packed['w_e'], packed['w_out'],
      packed['b_xh'], packed['b_e'], packed['b_misc'])

    pred = out[:B, :F]
    h_new = out[:B, GF:GF + H][None]
    c_new = out[:B, GF + GH:GF + GH + H][None]
    attw = out[:B, GF + 2 * GH:GF + 2 * GH + S]
    return pred, h_new, c_new, attw


# ---------------------------------------------------------------------- reference
def reference_forward(params, input_seq, h, c, encoder_outputs):
    """Plain-JAX (f32) mirror of the PyTorch forward, for verification."""
    H = h.shape[-1]
    h_last = h[-1]
    hid_p = h_last @ params['hid_proj_w'].T + params['hid_proj_b']
    enc_p = encoder_outputs @ params['enc_proj_w'].T + params['enc_proj_b']
    S = enc_p.shape[1]
    hid_rep = jnp.repeat(hid_p[:, None, :], S, axis=1)
    energy = jnp.tanh(jnp.concatenate([hid_rep, enc_p], axis=2) @ params['attn_w'].T
                      + params['attn_b'])
    scores = jnp.einsum('a,bsa->bs', params['attn_v'][0], energy)
    attw = jax.nn.softmax(scores, axis=1)
    context = jnp.einsum('bs,bsa->ba', attw, enc_p)

    gates = (input_seq @ params['w_ih'].T + params['b_ih']
             + h_last @ params['w_hh'].T + params['b_hh'])
    i_g = jax.nn.sigmoid(gates[:, :H])
    f_g = jax.nn.sigmoid(gates[:, H:2 * H])
    g_g = jnp.tanh(gates[:, 2 * H:3 * H])
    o_g = jax.nn.sigmoid(gates[:, 3 * H:])
    c_new = f_g * c[-1] + i_g * g_g
    h_new = o_g * jnp.tanh(c_new)
    out = jnp.concatenate([h_new, context], axis=1)
    pred = out @ params['lin_w'].T + params['lin_b']
    return pred, h_new[None], c_new[None], attw


if __name__ == "__main__":
    B, F, H, S = 2, 16, 64, 8   # batch, input_feature_len, hidden_size, encoder seq len
    key = jax.random.PRNGKey(0)
    kp, k1, k2, k3, k4 = jax.random.split(key, 5)

    params = make_params(kp, F, H)
    input_seq = jax.random.normal(k1, (B, F), jnp.float32)
    h0 = jax.random.normal(k2, (1, B, H), jnp.float32)
    c0 = jax.random.normal(k3, (1, B, H), jnp.float32)
    encoder_outputs = jax.random.normal(k4, (B, S, H), jnp.float32)

    packed = prepare_weights(params)          # build-time; hoisted out of the step path

    outs = decoder_with_attention(packed, input_seq, h0, c0, encoder_outputs)
    outs = jax.block_until_ready(outs)

    refs = reference_forward(params, input_seq, h0, c0, encoder_outputs)
    names = ["pred", "h", "c", "attn_weights"]
    # bf16 MXU operands (f32 accumulate) + approx reciprocal in the softmax =>
    # looser tolerance than the pure-f32 variant (review's correctness note).
    tol = 3e-2
    for name, got, want in zip(names, outs, refs):
        assert got.shape == want.shape, (name, got.shape, want.shape)
        err = float(jnp.max(jnp.abs(got - want)))
        assert err < tol, (name, err)
    print("KERNEL_OK")
</pallas_src>

<mosaic_0001>
module attributes {stable_mosaic.version = 11 : i64} {
  func.func @decoder_attn_kernel(%arg0: memref<8x256xbf16, #tpu.memory_space<vmem>>, %arg1: memref<8x128xf32, #tpu.memory_space<vmem>>, %arg2: memref<64x64xbf16, #tpu.memory_space<vmem>>, %arg3: memref<256x640xbf16, #tpu.memory_space<vmem>>, %arg4: memref<64x256xbf16, #tpu.memory_space<vmem>>, %arg5: memref<256x128xbf16, #tpu.memory_space<vmem>>, %arg6: memref<1x640xf32, #tpu.memory_space<vmem>>, %arg7: memref<1x256xf32, #tpu.memory_space<vmem>>, %arg8: memref<1x384xf32, #tpu.memory_space<vmem>>, %arg9: memref<8x512xf32, #tpu.memory_space<vmem>>) attributes {dimension_semantics = [], scalar_prefetch = 0 : i64, scratch_operands = 0 : i64, tpu.core_type = #tpu.core_type<tc>} {
    %c0 = arith.constant 0 : index
    %c0_0 = arith.constant 0 : index
    %0 = vector.load %arg0[%c0, %c0_0] : memref<8x256xbf16, #tpu.memory_space<vmem>>, vector<8x256xbf16>
    %c0_1 = arith.constant 0 : index
    %c0_2 = arith.constant 0 : index
    %1 = vector.load %arg3[%c0_1, %c0_2] : memref<256x640xbf16, #tpu.memory_space<vmem>>, vector<256x640xbf16>
    %cst = arith.constant dense<0.000000e+00> : vector<8x640xf32>
    %2 = tpu.matmul %0, %1, %cst {dimension_numbers = #tpu.dot_dimension_numbers<[1], [0], [0], [1], [0, 0, 1, 1], [], []>} : vector<8x256xbf16>, vector<256x640xbf16>, vector<8x640xf32> -> vector<8x640xf32>
    %c0_3 = arith.constant 0 : index
    %c0_4 = arith.constant 0 : index
    %3 = vector.load %arg6[%c0_3, %c0_4] : memref<1x640xf32, #tpu.memory_space<vmem>>, vector<1x640xf32>
    %4 = vector.broadcast %3 : vector<1x640xf32> to vector<8x640xf32>
    %5 = arith.addf %2, %4 : vector<8x640xf32>
    %6 = vector.extract_strided_slice %5 {offsets = [0, 0], sizes = [8, 128], strides = [1, 1]} : vector<8x640xf32> to vector<8x128xf32>
    %7 = arith.negf %6 : vector<8x128xf32>
    %8 = math.exp %7 : vector<8x128xf32>
    %cst_5 = arith.constant 1.000000e+00 : f32
    %9 = vector.broadcast %cst_5 : f32 to vector<8x128xf32>
    %10 = arith.addf %9, %8 : vector<8x128xf32>
    %11 = arith.divf %9, %10 : vector<8x128xf32>
    %12 = vector.extract_strided_slice %5 {offsets = [0, 128], sizes = [8, 128], strides = [1, 1]} : vector<8x640xf32> to vector<8x128xf32>
    %13 = arith.negf %12 : vector<8x128xf32>
    %14 = math.exp %13 : vector<8x128xf32>
    %cst_6 = arith.constant 1.000000e+00 : f32
    %15 = vector.broadcast %cst_6 : f32 to vector<8x128xf32>
    %16 = arith.addf %15, %14 : vector<8x128xf32>
    %17 = arith.divf %15, %16 : vector<8x128xf32>
    %18 = vector.extract_strided_slice %5 {offsets = [0, 256], sizes = [8, 128], strides = [1, 1]} : vector<8x640xf32> to vector<8x128xf32>
    %19 = math.tanh %18 : vector<8x128xf32>
    %20 = vector.extract_strided_slice %5 {offsets = [0, 384], sizes = [8, 128], strides = [1, 1]} : vector<8x640xf32> to vector<8x128xf32>
    %21 = arith.negf %20 : vector<8x128xf32>
    %22 = math.exp %21 : vector<8x128xf32>
    %cst_7 = arith.constant 1.000000e+00 : f32
    %23 = vector.broadcast %cst_7 : f32 to vector<8x128xf32>
    %24 = arith.addf %23, %22 : vector<8x128xf32>
    %25 = arith.divf %23, %24 : vector<8x128xf32>
    %26 = vector.extract_strided_slice %5 {offsets = [0, 512], sizes = [8, 128], strides = [1, 1]} : vector<8x640xf32> to vector<8x128xf32>
    %c0_8 = arith.constant 0 : index
    %c0_9 = arith.constant 0 : index
    %27 = vector.load %arg1[%c0_8, %c0_9] : memref<8x128xf32, #tpu.memory_space<vmem>>, vector<8x128xf32>
    %28 = arith.mulf %17, %27 : vector<8x128xf32>
    %29 = arith.mulf %11, %19 : vector<8x128xf32>
    %30 = arith.addf %28, %29 : vector<8x128xf32>
    %31 = math.tanh %30 : vector<8x128xf32>
    %32 = arith.mulf %25, %31 : vector<8x128xf32>
    %c0_10 = arith.constant 0 : index
    %c0_11 = arith.constant 0 : index
    %33 = vector.load %arg2[%c0_10, %c0_11] : memref<64x64xbf16, #tpu.memory_space<vmem>>, vector<64x64xbf16>
    %c0_12 = arith.constant 0 : index
    %c0_13 = arith.constant 0 : index
    %34 = vector.load %arg4[%c0_12, %c0_13] : memref<64x256xbf16, #tpu.memory_space<vmem>>, vector<64x256xbf16>
    %cst_14 = arith.constant dense<0.000000e+00> : vector<64x256xf32>
    %35 = tpu.matmul %33, %34, %cst_14 {dimension_numbers = #tpu.dot_dimension_numbers<[1], [0], [0], [1], [0, 0, 1, 1], [], []>} : vector<64x64xbf16>, vector<64x256xbf16>, vector<64x256xf32> -> vector<64x256xf32>
    %c0_15 = arith.constant 0 : index
    %c0_16 = arith.constant 0 : index
    %36 = vector.load %arg7[%c0_15, %c0_16] : memref<1x256xf32, #tpu.memory_space<vmem>>, vector<1x256xf32>
    %37 = vector.broadcast %36 : vector<1x256xf32> to vector<64x256xf32>
    %38 = arith.addf %35, %37 : vector<64x256xf32>
    %39 = vector.extract_strided_slice %38 {offsets = [0, 0], sizes = [64, 128], strides = [1, 1]} : vector<64x256xf32> to vector<64x128xf32>
    %40 = vector.shape_cast %39 : vector<64x128xf32> to vector<8x8x128xf32>
    %41 = vector.extract_strided_slice %38 {offsets = [0, 128], sizes = [64, 128], strides = [1, 1]} : vector<64x256xf32> to vector<64x128xf32>
    %42 = vector.shape_cast %41 : vector<64x128xf32> to vector<8x8x128xf32>
    %c0_17 = arith.constant 0 : index
    %c0_18 = arith.constant 0 : index
    %43 = vector.load %arg8[%c0_17, %c0_18] : memref<1x384xf32, #tpu.memory_space<vmem>>, vector<1x128xf32>
    %c0_19 = arith.constant 0 : index
    %c128 = arith.constant 128 : index
    %44 = vector.load %arg8[%c0_19, %c128] : memref<1x384xf32, #tpu.memory_space<vmem>>, vector<1x128xf32>
    %c0_20 = arith.constant 0 : index
    %c256 = arith.constant 256 : index
    %45 = vector.load %arg8[%c0_20, %c256] : memref<1x384xf32, #tpu.memory_space<vmem>>, vector<1x128xf32>
    %46 = vector.shape_cast %26 : vector<8x128xf32> to vector<8x1x128xf32>
    %47 = vector.broadcast %46 : vector<8x1x128xf32> to vector<8x8x128xf32>
    %48 = arith.addf %47, %42 : vector<8x8x128xf32>
    %49 = vector.shape_cast %43 : vector<1x128xf32> to vector<1x1x128xf32>
    %50 = vector.broadcast %49 : vector<1x1x128xf32> to vector<8x8x128xf32>
    %51 = arith.addf %48, %50 : vector<8x8x128xf32>
    %52 = math.tanh %51 : vector<8x8x128xf32>
    %53 = vector.shape_cast %44 : vector<1x128xf32> to vector<1x1x128xf32>
    %54 = vector.broadcast %53 : vector<1x1x128xf32> to vector<8x8x128xf32>
    %55 = arith.mulf %52, %54 : vector<8x8x128xf32>
    %cst_21 = arith.constant dense<0.000000e+00> : vector<8x8xf32>
    %56 = vector.multi_reduction <add>, %55, %cst_21 [2] : vector<8x8x128xf32> to vector<8x8xf32>
    %cst_22 = arith.constant dense<0xFF800000> : vector<8xf32>
    %57 = vector.multi_reduction <maximumf>, %56, %cst_22 [1] : vector<8x8xf32> to vector<8xf32>
    %58 = vector.shape_cast %57 : vector<8xf32> to vector<8x1xf32>
    %59 = vector.broadcast %58 : vector<8x1xf32> to vector<8x8xf32>
    %60 = arith.subf %56, %59 : vector<8x8xf32>
    %61 = math.exp %60 : vector<8x8xf32>
    %cst_23 = arith.constant dense<0.000000e+00> : vector<8xf32>
    %62 = vector.multi_reduction <add>, %61, %cst_23 [1] : vector<8x8xf32> to vector<8xf32>
    %63 = vector.shape_cast %62 : vector<8xf32> to vector<8x1xf32>
    %64 = tpu.reciprocal %63 {approx = true} : vector<8x1xf32> -> vector<8x1xf32>
    %65 = vector.broadcast %64 : vector<8x1xf32> to vector<8x8xf32>
    %66 = arith.mulf %61, %65 : vector<8x8xf32>
    %67 = vector.shape_cast %66 : vector<8x8xf32> to vector<8x8x1xf32>
    %68 = vector.broadcast %67 : vector<8x8x1xf32> to vector<8x8x128xf32>
    %69 = arith.mulf %68, %40 : vector<8x8x128xf32>
    %cst_24 = arith.constant dense<0.000000e+00> : vector<8x128xf32>
    %70 = vector.multi_reduction <add>, %69, %cst_24 [1] : vector<8x8x128xf32> to vector<8x128xf32>
    %71 = tpu.concatenate %32, %70 in 1 : vector<8x128xf32>, vector<8x128xf32> -> vector<8x256xf32>
    %72 = arith.truncf %71 : vector<8x256xf32> to vector<8x256xbf16>
    %c0_25 = arith.constant 0 : index
    %c0_26 = arith.constant 0 : index
    %73 = vector.load %arg5[%c0_25, %c0_26] : memref<256x128xbf16, #tpu.memory_space<vmem>>, vector<256x128xbf16>
    %cst_27 = arith.constant dense<0.000000e+00> : vector<8x128xf32>
    %74 = tpu.matmul %72, %73, %cst_27 {dimension_numbers = #tpu.dot_dimension_numbers<[1], [0], [0], [1], [0, 0, 1, 1], [], []>} : vector<8x256xbf16>, vector<256x128xbf16>, vector<8x128xf32> -> vector<8x128xf32>
    %75 = vector.broadcast %45 : vector<1x128xf32> to vector<8x128xf32>
    %76 = arith.addf %74, %75 : vector<8x128xf32>
    %cst_28 = arith.constant 0.000000e+00 : f32
    %77 = vector.broadcast %cst_28 : f32 to vector<8x120xf32>
    %78 = tpu.concatenate %66, %77 in 1 : vector<8x8xf32>, vector<8x120xf32> -> vector<8x128xf32>
    %79 = tpu.concatenate %76, %32, %30, %78 in 1 : vector<8x128xf32>, vector<8x128xf32>, vector<8x128xf32>, vector<8x128xf32> -> vector<8x512xf32>
    %c0_29 = arith.constant 0 : index
    %c0_30 = arith.constant 0 : index
    %80 = vector.load %arg9[%c0_29, %c0_30] : memref<8x512xf32, #tpu.memory_space<vmem>>, vector<8x512xf32>
    tpu.vector_store %arg9[%c0_29, %c0_30], %79 {strides = array<i32>} : memref<8x512xf32, #tpu.memory_space<vmem>>, vector<8x512xf32>,
    return
  }
}

</mosaic_0001>

<llo_original>
// kernel: decoder_with_attention.1
$region0: #{decoder_with_attention.1}
  #allocation0 [shape = 'u32[]', space=smem, size = 0x4, offset = 0x4, fixed_abs, tag = 'smem constant byte address 0x4 - core index']
  #allocation1 [shape = 'u32[144,128]{1,0:T(1,128)}', space=vmem, size = 0x12000, scoped, tag = 'internal scratch']
  %s0 = inlined_call_operand.vmem [shape: bf16[8,256], index: 0, kind: input, shape index: {}]
  %s1 = inlined_call_operand.vmem [shape: f32[8,128], index: 1, kind: input, shape index: {}]
  %s2 = inlined_call_operand.vmem [shape: bf16[64,64], index: 2, kind: input, shape index: {}]
  %s3 = inlined_call_operand.hbm [shape: bf16[256,640], index: 3, kind: input, shape index: {}]
  %s4 = inlined_call_operand.hbm [shape: bf16[64,256], index: 4, kind: input, shape index: {}]
  %s5 = inlined_call_operand.vmem [shape: bf16[256,128], index: 5, kind: input, shape index: {}]
  %s6 = inlined_call_operand.hbm [shape: f32[1,640], index: 6, kind: input, shape index: {}]
  %s7 = inlined_call_operand.hbm [shape: f32[1,256], index: 7, kind: input, shape index: {}]
  %s8 = inlined_call_operand.hbm [shape: f32[1,384], index: 8, kind: input, shape index: {}]
  %s9 = inlined_call_operand.vmem [shape: f32[8,512], index: 9, kind: output, shape index: {}]
  %s10 = sld [smem:[#allocation0]]
  $region66: #{decoder_with_attention.1} parent=0
    _
  %s12 = ssub.s32 1, %s10
  %s13 = scalar_select 0, %s12, %s10
  $region1: #{decoder_with_attention.1} parent=0
    #allocation2 [shape = 'u8[327680]{0}', space=vmem, size = 0x50000, scoped, tag = 'input window, operand 3, single buffered']
    #allocation3 [shape = 's32[1]{0}', space=sflag, size = 0x4, scoped, tag = 'scoped memory for decoder_with_attention.1']
    #allocation4 [shape = 'u8[32768]{0}', space=vmem, size = 0x8000, scoped, tag = 'input window, operand 4, single buffered']
    #allocation5 [shape = 's32[1]{0}', space=sflag, size = 0x4, scoped, tag = 'scoped memory for decoder_with_attention.1']
    #allocation6 [shape = 'u8[2560]{0}', space=vmem, size = 0xc00, scoped, tag = 'input window, operand 6, single buffered']
    #allocation7 [shape = 'u8[1024]{0}', space=vmem, size = 0x400, scoped, tag = 'input window, operand 7, single buffered']
    #allocation8 [shape = 's32[1]{0}', space=sflag, size = 0x4, scoped, tag = 'scoped memory for decoder_with_attention.1']
    #allocation9 [shape = 'u8[1536]{0}', space=vmem, size = 0x800, scoped, tag = 'input window, operand 8, single buffered']
    %14 = vsyncpa [#allocation3], 0
    %15 = vsyncpa [#allocation5], 0
    %16 = vsyncpa [#allocation8], 0
    // Predicated region
    $region2: #{decoder_with_attention.1} parent=1 // pred_check
      _
    $region3: #{decoder_with_attention.1} parent=1 // pred_check_branch
      %18 = sbr.rel (0) target = $region5
    $region4: #{decoder_with_attention.1} parent=1 // pred_region
      _
    $region5: #{decoder_with_attention.1} parent=1 // pred_fallthru
      _
    // Predicated region
    $region6: #{decoder_with_attention.1} parent=1 // pred_check
      _
    $region7: #{decoder_with_attention.1} parent=1 // pred_check_branch
      %20 = sbr.rel (0) target = $region9
    $region8: #{decoder_with_attention.1} parent=1 // pred_region
      _
    $region9: #{decoder_with_attention.1} parent=1 // pred_fallthru
      _
    // Predicated region
    $region10: #{decoder_with_attention.1} parent=1 // pred_check
      _
    $region11: #{decoder_with_attention.1} parent=1 // pred_check_branch
      %22 = sbr.rel (0) target = $region13
    $region12: #{decoder_with_attention.1} parent=1 // pred_region
      _
    $region13: #{decoder_with_attention.1} parent=1 // pred_fallthru
      _
    // Predicated region
    $region14: #{decoder_with_attention.1} parent=1 // pred_check
      _
    $region15: #{decoder_with_attention.1} parent=1 // pred_check_branch
      %24 = sbr.rel (0) target = $region17
    $region16: #{decoder_with_attention.1} parent=1 // pred_region
      %s26 = ssub.s32 10240, 10240
      %27 = vsyncadd [#allocation3], %s26
      %s28 = sshll.u32 [#allocation2], 4
      %s29 = int_to_ptr.vmem [resolvable:$true] %s28
      %34 = dma.hbm_to_vmem [thread:$0]  %s3, 10240, %s29, [#allocation3], 320, 320, 20
    $region17: #{decoder_with_attention.1} parent=1 // pred_fallthru
      _
    // Predicated region
    $region18: #{decoder_with_attention.1} parent=1 // pred_check
      _
    $region19: #{decoder_with_attention.1} parent=1 // pred_check_branch
      %36 = sbr.rel (0) target = $region21
    $region20: #{decoder_with_attention.1} parent=1 // pred_region
      %s38 = ssub.s32 1024, 1024
      %39 = vsyncadd [#allocation5], %s38
      %s40 = sshll.u32 [#allocation4], 4
      %s41 = int_to_ptr.vmem [resolvable:$true] %s40
      %46 = dma.hbm_to_vmem [thread:$0]  %s4, 1024, %s41, [#allocation5], 128, 128, 8
    $region21: #{decoder_with_attention.1} parent=1 // pred_fallthru
      _
    // Predicated region
    $region22: #{decoder_with_attention.1} parent=1 // pred_check
      _
    $region23: #{decoder_with_attention.1} parent=1 // pred_check_branch
      %48 = sbr.rel (0) target = $region25
    $region24: #{decoder_with_attention.1} parent=1 // pred_region
      _
    $region25: #{decoder_with_attention.1} parent=1 // pred_fallthru
      _
    // Predicated region
    $region26: #{decoder_with_attention.1} parent=1 // pred_check
      _
    $region27: #{decoder_with_attention.1} parent=1 // pred_check_branch
      %50 = sbr.rel (0) target = $region29
    $region28: #{decoder_with_attention.1} parent=1 // pred_region
      %s52 = ssub.s32 80, 80
      %53 = vsyncadd [#allocation5], %s52
      %s55 = sshll.u32 [#allocation6], 4
      %s56 = int_to_ptr.vmem [resolvable:$true] %s55
      %58 = dma.hbm_to_vmem [thread:$0]  %s6, 80, %s56, [#allocation5]
    $region29: #{decoder_with_attention.1} parent=1 // pred_fallthru
      _
    // Predicated region
    $region30: #{decoder_with_attention.1} parent=1 // pred_check
      _
    $region31: #{decoder_with_attention.1} parent=1 // pred_check_branch
      %60 = sbr.rel (0) target = $region33
    $region32: #{decoder_with_attention.1} parent=1 // pred_region
      %s62 = ssub.s32 32, 32
      %63 = vsyncadd [#allocation8], %s62
      %s65 = sshll.u32 [#allocation7], 4
      %s66 = int_to_ptr.vmem [resolvable:$true] %s65
      %68 = dma.hbm_to_vmem [thread:$0]  %s7, 32, %s66, [#allocation8]
    $region33: #{decoder_with_attention.1} parent=1 // pred_fallthru
      _
    // Predicated region
    $region34: #{decoder_with_attention.1} parent=1 // pred_check
      _
    $region35: #{decoder_with_attention.1} parent=1 // pred_check_branch
      %70 = sbr.rel (0) target = $region37
    $region36: #{decoder_with_attention.1} parent=1 // pred_region
      %s72 = ssub.s32 48, 48
      %73 = vsyncadd [#allocation8], %s72
      %s75 = sshll.u32 [#allocation9], 4
      %s76 = int_to_ptr.vmem [resolvable:$true] %s75
      %78 = dma.hbm_to_vmem [thread:$0]  %s8, 48, %s76, [#allocation8]
    $region37: #{decoder_with_attention.1} parent=1 // pred_fallthru
      _
    // Predicated region
    $region38: #{decoder_with_attention.1} parent=1 // pred_check
      _
    $region39: #{decoder_with_attention.1} parent=1 // pred_check_branch
      %80 = sbr.rel (0) target = $region41
    $region40: #{decoder_with_attention.1} parent=1 // pred_region
      %81 = dma.done [#allocation3], 10240
    $region41: #{decoder_with_attention.1} parent=1 // pred_fallthru
      _
    // Predicated region
    $region42: #{decoder_with_attention.1} parent=1 // pred_check
      _
    $region43: #{decoder_with_attention.1} parent=1 // pred_check_branch
      %83 = sbr.rel (0) target = $region45
    $region44: #{decoder_with_attention.1} parent=1 // pred_region
      %84 = dma.done [#allocation5], 1024
    $region45: #{decoder_with_attention.1} parent=1 // pred_fallthru
      _
    // Predicated region
    $region46: #{decoder_with_attention.1} parent=1 // pred_check
      _
    $region47: #{decoder_with_attention.1} parent=1 // pred_check_branch
      %86 = sbr.rel (0) target = $region49
    $region48: #{decoder_with_attention.1} parent=1 // pred_region
      %87 = dma.done [#allocation5], 80
    $region49: #{decoder_with_attention.1} parent=1 // pred_fallthru
      _
    // Predicated region
    $region50: #{decoder_with_attention.1} parent=1 // pred_check
      _
    $region51: #{decoder_with_attention.1} parent=1 // pred_check_branch
      %89 = sbr.rel (0) target = $region53
    $region52: #{decoder_with_attention.1} parent=1 // pred_region
      %90 = dma.done [#allocation8], 32
    $region53: #{decoder_with_attention.1} parent=1 // pred_fallthru
      _
    // Predicated region
    $region54: #{decoder_with_attention.1} parent=1 // pred_check
      _
    $region55: #{decoder_with_attention.1} parent=1 // pred_check_branch
      %92 = sbr.rel (0) target = $region57
    $region56: #{decoder_with_attention.1} parent=1 // pred_region
      %93 = dma.done [#allocation8], 48
    $region57: #{decoder_with_attention.1} parent=1 // pred_fallthru
      _
    %v95 = vld [vmem:[%s0] sm:$0xff]
    %v96 = vld [vmem:[#allocation2] sm:$0xff]
    %v97 = vld [vmem:[#allocation2 + $0x8] sm:$0xff]
    %v98 = vld [vmem:[#allocation2 + $0x10] sm:$0xf]
    %v99 = vld [vmem:[#allocation2 + $0x14] sm:$0xff]
    %v100 = vld [vmem:[#allocation2 + $0x1c] sm:$0xff]
    %v101 = vld [vmem:[#allocation2 + $0x24] sm:$0xf]
    %v102 = vld [vmem:[#allocation2 + $0x28] sm:$0xff]
    %v103 = vld [vmem:[#allocation2 + $0x30] sm:$0xff]
    %v104 = vld [vmem:[#allocation2 + $0x38] sm:$0xf]
    %v105 = vld [vmem:[#allocation2 + $0x3c] sm:$0xff]
    %v106 = vld [vmem:[#allocation2 + $0x44] sm:$0xff]
    %v107 = vld [vmem:[#allocation2 + $0x4c] sm:$0xf]
    %v108 = vld [vmem:[#allocation2 + $0x50] sm:$0xff]
    %v109 = vld [vmem:[#allocation2 + $0x58] sm:$0xff]
    %v110 = vld [vmem:[#allocation2 + $0x60] sm:$0xf]
    %v111 = vld [vmem:[#allocation2 + $0x64] sm:$0xff]
    %v112 = vld [vmem:[#allocation2 + $0x6c] sm:$0xff]
    %v113 = vld [vmem:[#allocation2 + $0x74] sm:$0xf]
    %v114 = vld [vmem:[#allocation2 + $0x78] sm:$0xff]
    %v115 = vld [vmem:[#allocation2 + $0x80] sm:$0xff]
    %v116 = vld [vmem:[#allocation2 + $0x88] sm:$0xf]
    %v117 = vld [vmem:[#allocation2 + $0x8c] sm:$0xff]
    %v118 = vld [vmem:[#allocation2 + $0x94] sm:$0xff]
    %v119 = vld [vmem:[#allocation2 + $0x9c] sm:$0xf]
    %v120 = vld [vmem:[#allocation2 + $0xa0] sm:$0xff]
    %v121 = vld [vmem:[#allocation2 + $0xa8] sm:$0xff]
    %v122 = vld [vmem:[#allocation2 + $0xb0] sm:$0xf]
    %v123 = vld [vmem:[#allocation2 + $0xb4] sm:$0xff]
    %v124 = vld [vmem:[#allocation2 + $0xbc] sm:$0xff]
    %v125 = vld [vmem:[#allocation2 + $0xc4] sm:$0xf]
    %v126 = vld [vmem:[#allocation2 + $0xc8] sm:$0xff]
    %v127 = vld [vmem:[#allocation2 + $0xd0] sm:$0xff]
    %v128 = vld [vmem:[#allocation2 + $0xd8] sm:$0xf]
    %v129 = vld [vmem:[#allocation2 + $0xdc] sm:$0xff]
    %v130 = vld [vmem:[#allocation2 + $0xe4] sm:$0xff]
    %v131 = vld [vmem:[#allocation2 + $0xec] sm:$0xf]
    %v132 = vld [vmem:[#allocation2 + $0xf0] sm:$0xff]
    %v133 = vld [vmem:[#allocation2 + $0xf8] sm:$0xff]
    %v134 = vld [vmem:[#allocation2 + $0x100] sm:$0xf]
    %v135 = vld [vmem:[#allocation2 + $0x104] sm:$0xff]
    %v136 = vld [vmem:[#allocation2 + $0x10c] sm:$0xff]
    %v137 = vld [vmem:[#allocation2 + $0x114] sm:$0xf]
    %v138 = vld [vmem:[#allocation2 + $0x118] sm:$0xff]
    %v139 = vld [vmem:[#allocation2 + $0x120] sm:$0xff]
    %v140 = vld [vmem:[#allocation2 + $0x128] sm:$0xf]
    %v141 = vld [vmem:[#allocation2 + $0x12c] sm:$0xff]
    %v142 = vld [vmem:[#allocation2 + $0x134] sm:$0xff]
    %v143 = vld [vmem:[#allocation2 + $0x13c] sm:$0xf]
    %v144 = vld [vmem:[#allocation2 + $0x140] sm:$0xff]
    %v145 = vld [vmem:[#allocation2 + $0x148] sm:$0xff]
    %v146 = vld [vmem:[#allocation2 + $0x150] sm:$0xf]
    %v147 = vld [vmem:[#allocation2 + $0x154] sm:$0xff]
    %v148 = vld [vmem:[#allocation2 + $0x15c] sm:$0xff]
    %v149 = vld [vmem:[#allocation2 + $0x164] sm:$0xf]
    %v150 = vld [vmem:[#allocation2 + $0x168] sm:$0xff]
    %v151 = vld [vmem:[#allocation2 + $0x170] sm:$0xff]
    %v152 = vld [vmem:[#allocation2 + $0x178] sm:$0xf]
    %v153 = vld [vmem:[#allocation2 + $0x17c] sm:$0xff]
    %v154 = vld [vmem:[#allocation2 + $0x184] sm:$0xff]
    %v155 = vld [vmem:[#allocation2 + $0x18c] sm:$0xf]
    %v156 = vld [vmem:[#allocation2 + $0x190] sm:$0xff]
    %v157 = vld [vmem:[#allocation2 + $0x198] sm:$0xff]
    %v158 = vld [vmem:[#allocation2 + $0x1a0] sm:$0xf]
    %v159 = vld [vmem:[#allocation2 + $0x1a4] sm:$0xff]
    %v160 = vld [vmem:[#allocation2 + $0x1ac] sm:$0xff]
    %v161 = vld [vmem:[#allocation2 + $0x1b4] sm:$0xf]
    %v162 = vld [vmem:[#allocation2 + $0x1b8] sm:$0xff]
    %v163 = vld [vmem:[#allocation2 + $0x1c0] sm:$0xff]
    %v164 = vld [vmem:[#allocation2 + $0x1c8] sm:$0xf]
    %v165 = vld [vmem:[#allocation2 + $0x1cc] sm:$0xff]
    %v166 = vld [vmem:[#allocation2 + $0x1d4] sm:$0xff]
    %v167 = vld [vmem:[#allocation2 + $0x1dc] sm:$0xf]
    %v168 = vld [vmem:[#allocation2 + $0x1e0] sm:$0xff]
    %v169 = vld [vmem:[#allocation2 + $0x1e8] sm:$0xff]
    %v170 = vld [vmem:[#allocation2 + $0x1f0] sm:$0xf]
    %v171 = vld [vmem:[#allocation2 + $0x1f4] sm:$0xff]
    %v172 = vld [vmem:[#allocation2 + $0x1fc] sm:$0xff]
    %v173 = vld [vmem:[#allocation2 + $0x204] sm:$0xf]
    %v174 = vld [vmem:[#allocation2 + $0x208] sm:$0xff]
    %v175 = vld [vmem:[#allocation2 + $0x210] sm:$0xff]
    %v176 = vld [vmem:[#allocation2 + $0x218] sm:$0xf]
    %v177 = vld [vmem:[#allocation2 + $0x21c] sm:$0xff]
    %v178 = vld [vmem:[#allocation2 + $0x224] sm:$0xff]
    %v179 = vld [vmem:[#allocation2 + $0x22c] sm:$0xf]
    %v180 = vld [vmem:[#allocation2 + $0x230] sm:$0xff]
    %v181 = vld [vmem:[#allocation2 + $0x238] sm:$0xff]
    %v182 = vld [vmem:[#allocation2 + $0x240] sm:$0xf]
    %v183 = vld [vmem:[#allocation2 + $0x244] sm:$0xff]
    %v184 = vld [vmem:[#allocation2 + $0x24c] sm:$0xff]
    %v185 = vld [vmem:[#allocation2 + $0x254] sm:$0xf]
    %v186 = vld [vmem:[#allocation2 + $0x258] sm:$0xff]
    %v187 = vld [vmem:[#allocation2 + $0x260] sm:$0xff]
    %v188 = vld [vmem:[#allocation2 + $0x268] sm:$0xf]
    %v189 = vld [vmem:[#allocation2 + $0x26c] sm:$0xff]
    %v190 = vld [vmem:[#allocation2 + $0x274] sm:$0xff]
    %v191 = vld [vmem:[#allocation2 + $0x27c] sm:$0xf]
    %v192 = vld [vmem:[#allocation6] sm:$0x1f]
    %v194 = vlaneseq
    %v195 = vshrl.u32 %v194, 7
    %v196 = vsub.s32 0, %v195
    %v197 = vrot.slane %v192, %v196
    %v198 = vlaneseq
    %v199 = vshrl.u32 %v198, 7
    %v200 = vsub.s32 1, %v199
    %v201 = vrot.slane %v192, %v200
    %v202 = vlaneseq
    %v203 = vshrl.u32 %v202, 7
    %v204 = vsub.s32 2, %v203
    %v205 = vrot.slane %v192, %v204
    %v206 = vlaneseq
    %v207 = vshrl.u32 %v206, 7
    %v208 = vsub.s32 3, %v207
    %v209 = vrot.slane %v192, %v208
    %v210 = vlaneseq
    %v211 = vshrl.u32 %v210, 7
    %v212 = vsub.s32 4, %v211
    %v213 = vrot.slane %v192, %v212
    %v220 = vunpack.c.l.b16 %v95
    %v221 = vunpack.c.h.b16 %v95
    %v222 = vpack.c.b16 %v220, %v220
    %v223 = vpack.c.b16 %v221, %v221
    %v322 = vunpack.c.l.b16 %v96
    %v323 = vunpack.c.h.b16 %v96
    %v324 = vunpack.c.l.b16 %v97
    %v325 = vunpack.c.h.b16 %v97
    %v326 = vunpack.c.l.b16 %v98
    %v327 = vunpack.c.l.b16 %v99
    %v328 = vunpack.c.h.b16 %v99
    %v329 = vunpack.c.l.b16 %v100
    %v330 = vunpack.c.h.b16 %v100
    %v331 = vunpack.c.l.b16 %v101
    %v332 = vunpack.c.l.b16 %v102
    %v333 = vunpack.c.h.b16 %v102
    %v334 = vunpack.c.l.b16 %v103
    %v335 = vunpack.c.h.b16 %v103
    %v336 = vunpack.c.l.b16 %v104
    %v337 = vunpack.c.l.b16 %v105
    %v338 = vunpack.c.h.b16 %v105
    %v339 = vunpack.c.l.b16 %v106
    %v340 = vunpack.c.h.b16 %v106
    %v341 = vunpack.c.l.b16 %v107
    %v342 = vunpack.c.l.b16 %v108
    %v343 = vunpack.c.h.b16 %v108
    %v344 = vunpack.c.l.b16 %v109
    %v345 = vunpack.c.h.b16 %v109
    %v346 = vunpack.c.l.b16 %v110
    %v347 = vunpack.c.l.b16 %v111
    %v348 = vunpack.c.h.b16 %v111
    %v349 = vunpack.c.l.b16 %v112
    %v350 = vunpack.c.h.b16 %v112
    %v351 = vunpack.c.l.b16 %v113
    %v352 = vunpack.c.l.b16 %v114
    %v353 = vunpack.c.h.b16 %v114
    %v354 = vunpack.c.l.b16 %v115
    %v355 = vunpack.c.h.b16 %v115
    %v356 = vunpack.c.l.b16 %v116
    %v357 = vunpack.c.l.b16 %v117
    %v358 = vunpack.c.h.b16 %v117
    %v359 = vunpack.c.l.b16 %v118
    %v360 = vunpack.c.h.b16 %v118
    %v361 = vunpack.c.l.b16 %v119
    %v362 = vunpack.c.l.b16 %v120
    %v363 = vunpack.c.h.b16 %v120
    %v364 = vunpack.c.l.b16 %v121
    %v365 = vunpack.c.h.b16 %v121
    %v366 = vunpack.c.l.b16 %v122
    %v367 = vunpack.c.l.b16 %v123
    %v368 = vunpack.c.h.b16 %v123
    %v369 = vunpack.c.l.b16 %v124
    %v370 = vunpack.c.h.b16 %v124
    %v371 = vunpack.c.l.b16 %v125
    %v372 = vunpack.c.l.b16 %v126
    %v373 = vunpack.c.h.b16 %v126
    %v374 = vunpack.c.l.b16 %v127
    %v375 = vunpack.c.h.b16 %v127
    %v376 = vunpack.c.l.b16 %v128
    %v377 = vunpack.c.l.b16 %v129
    %v378 = vunpack.c.h.b16 %v129
    %v379 = vunpack.c.l.b16 %v130
    %v380 = vunpack.c.h.b16 %v130
    %v381 = vunpack.c.l.b16 %v131
    %v382 = vunpack.c.l.b16 %v132
    %v383 = vunpack.c.h.b16 %v132
    %v384 = vunpack.c.l.b16 %v133
    %v385 = vunpack.c.h.b16 %v133
    %v386 = vunpack.c.l.b16 %v134
    %v387 = vunpack.c.l.b16 %v135
    %v388 = vunpack.c.h.b16 %v135
    %v389 = vunpack.c.l.b16 %v136
    %v390 = vunpack.c.h.b16 %v136
    %v391 = vunpack.c.l.b16 %v137
    %v392 = vunpack.c.l.b16 %v138
    %v393 = vunpack.c.h.b16 %v138
    %v394 = vunpack.c.l.b16 %v139
    %v395 = vunpack.c.h.b16 %v139
    %v396 = vunpack.c.l.b16 %v140
    %v397 = vunpack.c.l.b16 %v141
    %v398 = vunpack.c.h.b16 %v141
    %v399 = vunpack.c.l.b16 %v142
    %v400 = vunpack.c.h.b16 %v142
    %v401 = vunpack.c.l.b16 %v143
    %v402 = vunpack.c.l.b16 %v144
    %v403 = vunpack.c.h.b16 %v144
    %v404 = vunpack.c.l.b16 %v145
    %v405 = vunpack.c.h.b16 %v145
    %v406 = vunpack.c.l.b16 %v146
    %v407 = vunpack.c.l.b16 %v147
    %v408 = vunpack.c.h.b16 %v147
    %v409 = vunpack.c.l.b16 %v148
    %v410 = vunpack.c.h.b16 %v148
    %v411 = vunpack.c.l.b16 %v149
    %v412 = vunpack.c.l.b16 %v150
    %v413 = vunpack.c.h.b16 %v150
    %v414 = vunpack.c.l.b16 %v151
    %v415 = vunpack.c.h.b16 %v151
    %v416 = vunpack.c.l.b16 %v152
    %v417 = vunpack.c.l.b16 %v153
    %v418 = vunpack.c.h.b16 %v153
    %v419 = vunpack.c.l.b16 %v154
    %v420 = vunpack.c.h.b16 %v154
    %v421 = vunpack.c.l.b16 %v155
    %v422 = vunpack.c.l.b16 %v156
    %v423 = vunpack.c.h.b16 %v156
    %v424 = vunpack.c.l.b16 %v157
    %v425 = vunpack.c.h.b16 %v157
    %v426 = vunpack.c.l.b16 %v158
    %v427 = vunpack.c.l.b16 %v159
    %v428 = vunpack.c.h.b16 %v159
    %v429 = vunpack.c.l.b16 %v160
    %v430 = vunpack.c.h.b16 %v160
    %v431 = vunpack.c.l.b16 %v161
    %v432 = vunpack.c.l.b16 %v162
    %v433 = vunpack.c.h.b16 %v162
    %v434 = vunpack.c.l.b16 %v163
    %v435 = vunpack.c.h.b16 %v163
    %v436 = vunpack.c.l.b16 %v164
    %v437 = vunpack.c.l.b16 %v165
    %v438 = vunpack.c.h.b16 %v165
    %v439 = vunpack.c.l.b16 %v166
    %v440 = vunpack.c.h.b16 %v166
    %v441 = vunpack.c.l.b16 %v167
    %v442 = vunpack.c.l.b16 %v168
    %v443 = vunpack.c.h.b16 %v168
    %v444 = vunpack.c.l.b16 %v169
    %v445 = vunpack.c.h.b16 %v169
    %v446 = vunpack.c.l.b16 %v170
    %v447 = vunpack.c.l.b16 %v171
    %v448 = vunpack.c.h.b16 %v171
    %v449 = vunpack.c.l.b16 %v172
    %v450 = vunpack.c.h.b16 %v172
    %v451 = vunpack.c.l.b16 %v173
    %v452 = vunpack.c.l.b16 %v174
    %v453 = vunpack.c.h.b16 %v174
    %v454 = vunpack.c.l.b16 %v175
    %v455 = vunpack.c.h.b16 %v175
    %v456 = vunpack.c.l.b16 %v176
    %v457 = vunpack.c.l.b16 %v177
    %v458 = vunpack.c.h.b16 %v177
    %v459 = vunpack.c.l.b16 %v178
    %v460 = vunpack.c.h.b16 %v178
    %v461 = vunpack.c.l.b16 %v179
    %v462 = vunpack.c.l.b16 %v180
    %v463 = vunpack.c.h.b16 %v180
    %v464 = vunpack.c.l.b16 %v181
    %v465 = vunpack.c.h.b16 %v181
    %v466 = vunpack.c.l.b16 %v182
    %v467 = vunpack.c.l.b16 %v183
    %v468 = vunpack.c.h.b16 %v183
    %v469 = vunpack.c.l.b16 %v184
    %v470 = vunpack.c.h.b16 %v184
    %v471 = vunpack.c.l.b16 %v185
    %v472 = vunpack.c.l.b16 %v186
    %v473 = vunpack.c.h.b16 %v186
    %v474 = vunpack.c.l.b16 %v187
    %v475 = vunpack.c.h.b16 %v187
    %v476 = vunpack.c.l.b16 %v188
    %v477 = vunpack.c.l.b16 %v189
    %v478 = vunpack.c.h.b16 %v189
    %v479 = vunpack.c.l.b16 %v190
    %v480 = vunpack.c.h.b16 %v190
    %v481 = vunpack.c.l.b16 %v191
    %v482 = vpack.c.b16 %v327, %v322
    %v483 = vpack.c.b16 %v328, %v323
    %v484 = vpack.c.b16 %v329, %v324
    %v485 = vpack.c.b16 %v330, %v325
    %v486 = vpack.c.b16 %v331, %v326
    %v487 = vpack.c.b16 %v337, %v332
    %v488 = vpack.c.b16 %v338, %v333
    %v489 = vpack.c.b16 %v339, %v334
    %v490 = vpack.c.b16 %v340, %v335
    %v491 = vpack.c.b16 %v341, %v336
    %v492 = vpack.c.b16 %v347, %v342
    %v493 = vpack.c.b16 %v348, %v343
    %v494 = vpack.c.b16 %v349, %v344
    %v495 = vpack.c.b16 %v350, %v345
    %v496 = vpack.c.b16 %v351, %v346
    %v497 = vpack.c.b16 %v357, %v352
    %v498 = vpack.c.b16 %v358, %v353
    %v499 = vpack.c.b16 %v359, %v354
    %v500 = vpack.c.b16 %v360, %v355
    %v501 = vpack.c.b16 %v361, %v356
    %v502 = vpack.c.b16 %v367, %v362
    %v503 = vpack.c.b16 %v368, %v363
    %v504 = vpack.c.b16 %v369, %v364
    %v505 = vpack.c.b16 %v370, %v365
    %v506 = vpack.c.b16 %v371, %v366
    %v507 = vpack.c.b16 %v377, %v372
    %v508 = vpack.c.b16 %v378, %v373
    %v509 = vpack.c.b16 %v379, %v374
    %v510 = vpack.c.b16 %v380, %v375
    %v511 = vpack.c.b16 %v381, %v376
    %v512 = vpack.c.b16 %v387, %v382
    %v513 = vpack.c.b16 %v388, %v383
    %v514 = vpack.c.b16 %v389, %v384
    %v515 = vpack.c.b16 %v390, %v385
    %v516 = vpack.c.b16 %v391, %v386
    %v517 = vpack.c.b16 %v397, %v392
    %v518 = vpack.c.b16 %v398, %v393
    %v519 = vpack.c.b16 %v399, %v394
    %v520 = vpack.c.b16 %v400, %v395
    %v521 = vpack.c.b16 %v401, %v396
    %v522 = vpack.c.b16 %v407, %v402
    %v523 = vpack.c.b16 %v408, %v403
    %v524 = vpack.c.b16 %v409, %v404
    %v525 = vpack.c.b16 %v410, %v405
    %v526 = vpack.c.b16 %v411, %v406
    %v527 = vpack.c.b16 %v417, %v412
    %v528 = vpack.c.b16 %v418, %v413
    %v529 = vpack.c.b16 %v419, %v414
    %v530 = vpack.c.b16 %v420, %v415
    %v531 = vpack.c.b16 %v421, %v416
    %v532 = vpack.c.b16 %v427, %v422
    %v533 = vpack.c.b16 %v428, %v423
    %v534 = vpack.c.b16 %v429, %v424
    %v535 = vpack.c.b16 %v430, %v425
    %v536 = vpack.c.b16 %v431, %v426
    %v537 = vpack.c.b16 %v437, %v432
    %v538 = vpack.c.b16 %v438, %v433
    %v539 = vpack.c.b16 %v439, %v434
    %v540 = vpack.c.b16 %v440, %v435
    %v541 = vpack.c.b16 %v441, %v436
    %v542 = vpack.c.b16 %v447, %v442
    %v543 = vpack.c.b16 %v448, %v443
    %v544 = vpack.c.b16 %v449, %v444
    %v545 = vpack.c.b16 %v450, %v445
    %v546 = vpack.c.b16 %v451, %v446
    %v547 = vpack.c.b16 %v457, %v452
    %v548 = vpack.c.b16 %v458, %v453
    %v549 = vpack.c.b16 %v459, %v454
    %v550 = vpack.c.b16 %v460, %v455
    %v551 = vpack.c.b16 %v461, %v456
    %v552 = vpack.c.b16 %v467, %v462
    %v553 = vpack.c.b16 %v468, %v463
    %v554 = vpack.c.b16 %v469, %v464
    %v555 = vpack.c.b16 %v470, %v465
    %v556 = vpack.c.b16 %v471, %v466
    %v557 = vpack.c.b16 %v477, %v472
    %v558 = vpack.c.b16 %v478, %v473
    %v559 = vpack.c.b16 %v479, %v474
    %v560 = vpack.c.b16 %v480, %v475
    %v561 = vpack.c.b16 %v481, %v476
    %642 = vmatprep.subr.bf16.mxu0 %v483
    %643 = vmatpush1.bf16.msra.mxu0 %v482
    %644 = vmatprep.subr.bf16.mxu0 %v488
    %645 = vmatpush1.bf16.msra.mxu0 %v487
    %646 = vmatprep.subr.bf16.mxu0 %v493
    %647 = vmatpush1.bf16.msra.mxu0 %v492
    %648 = vmatprep.subr.bf16.mxu0 %v498
    %649 = vmatpush1.bf16.msra.mxu0 %v497
    %650 = vmatprep.subr.bf16.mxu0 %v503
    %651 = vmatpush1.bf16.msra.mxu0 %v502
    %652 = vmatprep.subr.bf16.mxu0 %v508
    %653 = vmatpush1.bf16.msra.mxu0 %v507
    %654 = vmatprep.subr.bf16.mxu0 %v513
    %655 = vmatpush1.bf16.msra.mxu0 %v512
    %656 = vmatprep.subr.bf16.mxu0 %v518
    %657 = vmatpush1.bf16.msra.mxu0 %v517
    %658 = vmatprep.subr.bf16.mxu0 %v523
    %659 = vmatpush1.bf16.msra.mxu0 %v522
    %660 = vmatprep.subr.bf16.mxu0 %v528
    %661 = vmatpush1.bf16.msra.mxu0 %v527
    %662 = vmatprep.subr.bf16.mxu0 %v533
    %663 = vmatpush1.bf16.msra.mxu0 %v532
    %664 = vmatprep.subr.bf16.mxu0 %v538
    %665 = vmatpush1.bf16.msra.mxu0 %v537
    %666 = vmatprep.subr.bf16.mxu0 %v543
    %667 = vmatpush1.bf16.msra.mxu0 %v542
    %668 = vmatprep.subr.bf16.mxu0 %v548
    %669 = vmatpush1.bf16.msra.mxu0 %v547
    %670 = vmatprep.subr.bf16.mxu0 %v553
    %671 = vmatpush1.bf16.msra.mxu0 %v552
    %672 = vmatprep.subr.bf16.mxu0 %v558
    %673 = vmatpush1.bf16.msra.mxu0 %v557
    %674 = vmatprep.mubr.bf16.mxu0 %v223
    %675 = vmatmul.mubr.bf16.gmra.mrb[0].mxu0 %v222
    %v676 = vpop.f32.mrb[0].mxu0
    %v677 = vadd.f32 %v197, %v676
    %v678 = vpop.f32.mrb[0].mxu0
    %v679 = vadd.f32 %v201, %v678
    %v680 = vpop.f32.mrb[0].mxu0
    %v681 = vpop.f32.mrb[0].mxu0
    %682 = vdwg.mxu0
    %683 = vmatprep.subr.bf16.mxu0 %v485
    %684 = vmatpush1.bf16.msra.mxu0 %v484
    %685 = vmatprep.subr.bf16.mxu0 %v490
    %686 = vmatpush1.bf16.msra.mxu0 %v489
    %687 = vmatprep.subr.bf16.mxu0 %v495
    %688 = vmatpush1.bf16.msra.mxu0 %v494
    %689 = vmatprep.subr.bf16.mxu0 %v500
    %690 = vmatpush1.bf16.msra.mxu0 %v499
    %691 = vmatprep.subr.bf16.mxu0 %v505
    %692 = vmatpush1.bf16.msra.mxu0 %v504
    %693 = vmatprep.subr.bf16.mxu0 %v510
    %694 = vmatpush1.bf16.msra.mxu0 %v509
    %695 = vmatprep.subr.bf16.mxu0 %v515
    %696 = vmatpush1.bf16.msra.mxu0 %v514
    %697 = vmatprep.subr.bf16.mxu0 %v520
    %698 = vmatpush1.bf16.msra.mxu0 %v519
    %699 = vmatprep.subr.bf16.mxu0 %v525
    %700 = vmatpush1.bf16.msra.mxu0 %v524
    %701 = vmatprep.subr.bf16.mxu0 %v530
    %702 = vmatpush1.bf16.msra.mxu0 %v529
    %703 = vmatprep.subr.bf16.mxu0 %v535
    %704 = vmatpush1.bf16.msra.mxu0 %v534
    %705 = vmatprep.subr.bf16.mxu0 %v540
    %706 = vmatpush1.bf16.msra.mxu0 %v539
    %707 = vmatprep.subr.bf16.mxu0 %v545
    %708 = vmatpush1.bf16.msra.mxu0 %v544
    %709 = vmatprep.subr.bf16.mxu0 %v550
    %710 = vmatpush1.bf16.msra.mxu0 %v549
    %711 = vmatprep.subr.bf16.mxu0 %v555
    %712 = vmatpush1.bf16.msra.mxu0 %v554
    %713 = vmatprep.subr.bf16.mxu0 %v560
    %714 = vmatpush1.bf16.msra.mxu0 %v559
    %715 = vmatprep.mubr.bf16.mxu0 %v223
    %716 = vmatmul.mubr.bf16.gmra.mrb[0].mxu0 %v222
    %v717 = vpop.f32.mrb[0].mxu0
    %v718 = vadd.f32 %v205, %v717
    %v719 = vpop.f32.mrb[0].mxu0
    %v720 = vadd.f32 %v209, %v719
    %v721 = vpop.f32.mrb[0].mxu0
    %v722 = vpop.f32.mrb[0].mxu0
    %723 = vdwg.mxu0
    %724 = vmatprep.subr.bf16.mxu0 0
    %725 = vmatpush1.bf16.msra.mxu0 %v486
    %726 = vmatprep.subr.bf16.mxu0 0
    %727 = vmatpush1.bf16.msra.mxu0 %v491
    %728 = vmatprep.subr.bf16.mxu0 0
    %729 = vmatpush1.bf16.msra.mxu0 %v496
    %730 = vmatprep.subr.bf16.mxu0 0
    %731 = vmatpush1.bf16.msra.mxu0 %v501
    %732 = vmatprep.subr.bf16.mxu0 0
    %733 = vmatpush1.bf16.msra.mxu0 %v506
    %734 = vmatprep.subr.bf16.mxu0 0
    %735 = vmatpush1.bf16.msra.mxu0 %v511
    %736 = vmatprep.subr.bf16.mxu0 0
    %737 = vmatpush1.bf16.msra.mxu0 %v516
    %738 = vmatprep.subr.bf16.mxu0 0
    %739 = vmatpush1.bf16.msra.mxu0 %v521
    %740 = vmatprep.subr.bf16.mxu0 0
    %741 = vmatpush1.bf16.msra.mxu0 %v526
    %742 = vmatprep.subr.bf16.mxu0 0
    %743 = vmatpush1.bf16.msra.mxu0 %v531
    %744 = vmatprep.subr.bf16.mxu0 0
    %745 = vmatpush1.bf16.msra.mxu0 %v536
    %746 = vmatprep.subr.bf16.mxu0 0
    %747 = vmatpush1.bf16.msra.mxu0 %v541
    %748 = vmatprep.subr.bf16.mxu0 0
    %749 = vmatpush1.bf16.msra.mxu0 %v546
    %750 = vmatprep.subr.bf16.mxu0 0
    %751 = vmatpush1.bf16.msra.mxu0 %v551
    %752 = vmatprep.subr.bf16.mxu0 0
    %753 = vmatpush1.bf16.msra.mxu0 %v556
    %754 = vmatprep.subr.bf16.mxu0 0
    %755 = vmatpush1.bf16.msra.mxu0 %v561
    %756 = vmatprep.mubr.bf16.mxu0 %v223
    %757 = vmatmul.mubr.bf16.gmra.mrb[0].mxu0 %v222
    %v758 = vpop.f32.mrb[0].mxu0
    %v759 = vadd.f32 %v213, %v758
    %v760 = vpop.f32.mrb[0].mxu0
    %v761 = vpop.f32.mrb[0].mxu0
    %v762 = vpop.f32.mrb[0].mxu0
    %763 = vdwg.mxu0
    %v764 = vxor.u32 %v677, 2147483648
    %v765 = vmul.f32 %v764, 1.442695
    %v766 = vpow.pop %v765
    %v767 = vadd.f32 %v766, 1.0
    %v768 = vrcp.pop %v767
    %v769 = vmul.f32 1.0, %v768
    %v770 = vxor.u32 %v679, 2147483648
    %v771 = vmul.f32 %v770, 1.442695
    %v772 = vpow.pop %v771
    %v773 = vadd.f32 %v772, 1.0
    %v774 = vrcp.pop %v773
    %v775 = vmul.f32 1.0, %v774
    %v776 = vtanh.pop %v718
    %v777 = vxor.u32 %v720, 2147483648
    %v778 = vmul.f32 %v777, 1.442695
    %v779 = vpow.pop %v778
    %v780 = vadd.f32 %v779, 1.0
    %v781 = vrcp.pop %v780
    %v782 = vmul.f32 1.0, %v781
    %v783 = vld [vmem:[%s1] sm:$0xff]
    %v784 = vmul.f32 %v775, %v783
    %v785 = vmul.f32 %v769, %v776
    %v786 = vadd.f32 %v784, %v785
    %v787 = vtanh.pop %v786
    %v788 = vmul.f32 %v782, %v787
    %v789 = vld [vmem:[%s2] sm:$0xf]
    %v790 = vld [vmem:[%s2 + $0x4] sm:$0xf]
    %v791 = vld [vmem:[%s2 + $0x8] sm:$0xf]
    %v792 = vld [vmem:[%s2 + $0xc] sm:$0xf]
    %v793 = vld [vmem:[%s2 + $0x10] sm:$0xf]
    %v794 = vld [vmem:[%s2 + $0x14] sm:$0xf]
    %v795 = vld [vmem:[%s2 + $0x18] sm:$0xf]
    %v796 = vld [vmem:[%s2 + $0x1c] sm:$0xf]
    %v797 = vld [vmem:[#allocation4] sm:$0xff]
    %v798 = vld [vmem:[#allocation4 + $0x8] sm:$0xff]
    %v799 = vld [vmem:[#allocation4 + $0x10] sm:$0xff]
    %v800 = vld [vmem:[#allocation4 + $0x18] sm:$0xff]
    %v801 = vld [vmem:[#allocation4 + $0x20] sm:$0xff]
    %v802 = vld [vmem:[#allocation4 + $0x28] sm:$0xff]
    %v803 = vld [vmem:[#allocation4 + $0x30] sm:$0xff]
    %v804 = vld [vmem:[#allocation4 + $0x38] sm:$0xff]
    %v805 = vld [vmem:[#allocation7] sm:$0x3]
    %v807 = vlaneseq
    %v808 = vshrl.u32 %v807, 7
    %v809 = vsub.s32 0, %v808
    %v810 = vrot.slane %v805, %v809
    %v811 = vlaneseq
    %v812 = vshrl.u32 %v811, 7
    %v813 = vsub.s32 1, %v812
    %v814 = vrot.slane %v805, %v813
    %v825 = vunpack.c.l.b16 %v789
    %v826 = vunpack.c.l.b16 %v790
    %v827 = vunpack.c.l.b16 %v791
    %v828 = vunpack.c.l.b16 %v792
    %v829 = vunpack.c.l.b16 %v793
    %v830 = vunpack.c.l.b16 %v794
    %v831 = vunpack.c.l.b16 %v795
    %v832 = vunpack.c.l.b16 %v796
    %v833 = vpack.c.b16 %v826, %v825
    %v834 = vpack.c.b16 %v828, %v827
    %v835 = vpack.c.b16 %v830, %v829
    %v836 = vpack.c.b16 %v832, %v831
    %v845 = vunpack.c.l.b16 %v797
    %v846 = vunpack.c.h.b16 %v797
    %v847 = vunpack.c.l.b16 %v798
    %v848 = vunpack.c.h.b16 %v798
    %v849 = vunpack.c.l.b16 %v799
    %v850 = vunpack.c.h.b16 %v799
    %v851 = vunpack.c.l.b16 %v800
    %v852 = vunpack.c.h.b16 %v800
    %v853 = vunpack.c.l.b16 %v801
    %v854 = vunpack.c.h.b16 %v801
    %v855 = vunpack.c.l.b16 %v802
    %v856 = vunpack.c.h.b16 %v802
    %v857 = vunpack.c.l.b16 %v803
    %v858 = vunpack.c.h.b16 %v803
    %v859 = vunpack.c.l.b16 %v804
    %v860 = vunpack.c.h.b16 %v804
    %v861 = vpack.c.b16 %v847, %v845
    %v862 = vpack.c.b16 %v848, %v846
    %v863 = vpack.c.b16 %v851, %v849
    %v864 = vpack.c.b16 %v852, %v850
    %v865 = vpack.c.b16 %v855, %v853
    %v866 = vpack.c.b16 %v856, %v854
    %v867 = vpack.c.b16 %v859, %v857
    %v868 = vpack.c.b16 %v860, %v858
    %vm877 = vcmask 523264
    %v879 = vsel %vm877, %v833, 0
    %v882 = vsel %vm877, %v834, 0
    %v885 = vsel %vm877, %v835, 0
    %v888 = vsel %vm877, %v836, 0
    %890 = vmatprep.subr.bf16.mxu0 %v862
    %891 = vmatpush1.bf16.msra.mxu0 %v861
    %892 = vmatprep.subr.bf16.mxu0 %v864
    %893 = vmatpush1.bf16.msra.mxu0 %v863
    %894 = vmatprep.subr.bf16.mxu0 %v866
    %895 = vmatpush1.bf16.msra.mxu0 %v865
    %896 = vmatprep.subr.bf16.mxu0 %v868
    %897 = vmatpush1.bf16.msra.mxu0 %v867
    %898 = vmatprep.subr.bf16.mxu0 0
    %899 = vmatpush1.bf16.msra.mxu0 0
    %900 = vmatprep.subr.bf16.mxu0 0
    %901 = vmatpush1.bf16.msra.mxu0 0
    %902 = vmatprep.subr.bf16.mxu0 0
    %903 = vmatpush1.bf16.msra.mxu0 0
    %904 = vmatprep.subr.bf16.mxu0 0
    %905 = vmatpush1.bf16.msra.mxu0 0
    %906 = vmatprep.subr.bf16.mxu0 0
    %907 = vmatpush1.bf16.msra.mxu0 0
    %908 = vmatprep.subr.bf16.mxu0 0
    %909 = vmatpush1.bf16.msra.mxu0 0
    %910 = vmatprep.subr.bf16.mxu0 0
    %911 = vmatpush1.bf16.msra.mxu0 0
    %912 = vmatprep.subr.bf16.mxu0 0
    %913 = vmatpush1.bf16.msra.mxu0 0
    %914 = vmatprep.subr.bf16.mxu0 0
    %915 = vmatpush1.bf16.msra.mxu0 0
    %916 = vmatprep.subr.bf16.mxu0 0
    %917 = vmatpush1.bf16.msra.mxu0 0
    %918 = vmatprep.subr.bf16.mxu0 0
    %919 = vmatpush1.bf16.msra.mxu0 0
    %920 = vmatprep.subr.bf16.mxu0 0
    %921 = vmatpush1.bf16.msra.mxu0 0
    %922 = vmatprep.mubr.bf16.mxu0 0
    %923 = vmatmul.mubr.bf16.gmra.mrb[0].mxu0 %v879
    %v924 = vpop.f32.mrb[0].mxu0
    %v925 = vadd.f32 %v810, %v924
    %v926 = vpop.f32.mrb[0].mxu0
    %v927 = vadd.f32 %v814, %v926
    %v928 = vpop.f32.mrb[0].mxu0
    %v929 = vadd.f32 %v810, %v928
    %v930 = vpop.f32.mrb[0].mxu0
    %v931 = vadd.f32 %v814, %v930
    %932 = vmatprep.mubr.bf16.mxu0 0
    %933 = vmatmul.mubr.bf16.gmra.mrb[0].mxu0 %v882
    %v934 = vpop.f32.mrb[0].mxu0
    %v935 = vadd.f32 %v810, %v934
    %v936 = vpop.f32.mrb[0].mxu0
    %v937 = vadd.f32 %v814, %v936
    %v938 = vpop.f32.mrb[0].mxu0
    %v939 = vadd.f32 %v810, %v938
    %v940 = vpop.f32.mrb[0].mxu0
    %v941 = vadd.f32 %v814, %v940
    %942 = vmatprep.mubr.bf16.mxu0 0
    %943 = vmatmul.mubr.bf16.gmra.mrb[0].mxu0 %v885
    %v944 = vpop.f32.mrb[0].mxu0
    %v945 = vadd.f32 %v810, %v944
    %v946 = vpop.f32.mrb[0].mxu0
    %v947 = vadd.f32 %v814, %v946
    %v948 = vpop.f32.mrb[0].mxu0
    %v949 = vadd.f32 %v810, %v948
    %v950 = vpop.f32.mrb[0].mxu0
    %v951 = vadd.f32 %v814, %v950
    %952 = vmatprep.mubr.bf16.mxu0 0
    %953 = vmatmul.mubr.bf16.gmra.mrb[0].mxu0 %v888
    %v954 = vpop.f32.mrb[0].mxu0
    %v955 = vadd.f32 %v810, %v954
    %v956 = vpop.f32.mrb[0].mxu0
    %v957 = vadd.f32 %v814, %v956
    %v958 = vpop.f32.mrb[0].mxu0
    %v959 = vadd.f32 %v810, %v958
    %v960 = vpop.f32.mrb[0].mxu0
    %v961 = vadd.f32 %v814, %v960
    %962 = vdwg.mxu0
    %v963 = vld [vmem:[#allocation9] sm:$0x1]
    %v964 = vld [vmem:[#allocation9 + $0x1] sm:$0x1]
    %v965 = vld [vmem:[#allocation9 + $0x2] sm:$0x1]
    %v967 = vcombine.high %v759, %v759
    %v969 = vunpack.c.l.s4 1966171168
    %v970 = vunpack.c.0.s8 %v969
    %v971 = vlaneseq
    %v972 = vshrl.u32 %v971, 7
    %v973 = vsub.s32 %v970, %v972
    %v974 = vrot.slane %v759, %v973
    %v976 = vunpack.c.l.s4 1966171168
    %v977 = vunpack.c.0.s8 %v976
    %v978 = vlaneseq
    %v979 = vshrl.u32 %v978, 7
    %v980 = vsub.s32 %v977, %v979
    %v981 = vrot.slane %v967, %v980
    %v982 = vcombine.high %v974, %v974
    %v983 = vcombine.high %v981, %v981
    %v985 = vunpack.c.l.s4 1966171168
    %v986 = vunpack.c.0.s8 %v985
    %v987 = vlaneseq
    %v988 = vshrl.u32 %v987, 7
    %v989 = vsub.s32 %v986, %v988
    %v990 = vrot.slane %v974, %v989
    %v992 = vunpack.c.l.s4 1966171168
    %v993 = vunpack.c.0.s8 %v992
    %v994 = vlaneseq
    %v995 = vshrl.u32 %v994, 7
    %v996 = vsub.s32 %v993, %v995
    %v997 = vrot.slane %v981, %v996
    %v999 = vunpack.c.l.s4 1966171168
    %v1000 = vunpack.c.0.s8 %v999
    %v1001 = vlaneseq
    %v1002 = vshrl.u32 %v1001, 7
    %v1003 = vsub.s32 %v1000, %v1002
    %v1004 = vrot.slane %v982, %v1003
    %v1006 = vunpack.c.l.s4 1966171168
    %v1007 = vunpack.c.0.s8 %v1006
    %v1008 = vlaneseq
    %v1009 = vshrl.u32 %v1008, 7
    %v1010 = vsub.s32 %v1007, %v1009
    %v1011 = vrot.slane %v983, %v1010
    %v1012 = vcombine.high %v990, %v990
    %v1013 = vcombine.high %v997, %v997
    %v1014 = vcombine.high %v1004, %v1004
    %v1015 = vcombine.high %v1011, %v1011
    %v1016 = vlaneseq
    %v1017 = vshrl.u32 %v1016, 7
    %v1018 = vsub.s32 0, %v1017
    %v1019 = vrot.slane %v990, %v1018
    %v1020 = vlaneseq
    %v1021 = vshrl.u32 %v1020, 7
    %v1022 = vsub.s32 0, %v1021
    %v1023 = vrot.slane %v1004, %v1022
    %v1024 = vlaneseq
    %v1025 = vshrl.u32 %v1024, 7
    %v1026 = vsub.s32 0, %v1025
    %v1027 = vrot.slane %v1012, %v1026
    %v1028 = vlaneseq
    %v1029 = vshrl.u32 %v1028, 7
    %v1030 = vsub.s32 0, %v1029
    %v1031 = vrot.slane %v1014, %v1030
    %v1032 = vlaneseq
    %v1033 = vshrl.u32 %v1032, 7
    %v1034 = vsub.s32 0, %v1033
    %v1035 = vrot.slane %v997, %v1034
    %v1036 = vlaneseq
    %v1037 = vshrl.u32 %v1036, 7
    %v1038 = vsub.s32 0, %v1037
    %v1039 = vrot.slane %v1011, %v1038
    %v1040 = vlaneseq
    %v1041 = vshrl.u32 %v1040, 7
    %v1042 = vsub.s32 0, %v1041
    %v1043 = vrot.slane %v1013, %v1042
    %v1044 = vlaneseq
    %v1045 = vshrl.u32 %v1044, 7
    %v1046 = vsub.s32 0, %v1045
    %v1047 = vrot.slane %v1015, %v1046
    %v1056 = vadd.f32 %v1019, %v927
    %v1057 = vadd.f32 %v1023, %v931
    %v1058 = vadd.f32 %v1027, %v937
    %v1059 = vadd.f32 %v1031, %v941
    %v1060 = vadd.f32 %v1035, %v947
    %v1061 = vadd.f32 %v1039, %v951
    %v1062 = vadd.f32 %v1043, %v957
    %v1063 = vadd.f32 %v1047, %v961
    %v1065 = vlaneseq
    %v1066 = vshrl.u32 %v1065, 7
    %v1067 = vsub.s32 0, %v1066
    %v1068 = vrot.slane %v963, %v1067
    %v1070 = vadd.f32 %v1056, %v1068
    %v1071 = vadd.f32 %v1057, %v1068
    %v1072 = vadd.f32 %v1058, %v1068
    %v1073 = vadd.f32 %v1059, %v1068
    %v1074 = vadd.f32 %v1060, %v1068
    %v1075 = vadd.f32 %v1061, %v1068
    %v1076 = vadd.f32 %v1062, %v1068
    %v1077 = vadd.f32 %v1063, %v1068
    %v1078 = vtanh.pop %v1070
    %v1079 = vtanh.pop %v1071
    %v1080 = vtanh.pop %v1072
    %v1081 = vtanh.pop %v1073
    %v1082 = vtanh.pop %v1074
    %v1083 = vtanh.pop %v1075
    %v1084 = vtanh.pop %v1076
    %v1085 = vtanh.pop %v1077
    %v1087 = vlaneseq
    %v1088 = vshrl.u32 %v1087, 7
    %v1089 = vsub.s32 0, %v1088
    %v1090 = vrot.slane %v964, %v1089
    %v1092 = vmul.f32 %v1078, %v1090
    %v1093 = vmul.f32 %v1079, %v1090
    %v1094 = vmul.f32 %v1080, %v1090
    %v1095 = vmul.f32 %v1081, %v1090
    %v1096 = vmul.f32 %v1082, %v1090
    %v1097 = vmul.f32 %v1083, %v1090
    %v1098 = vmul.f32 %v1084, %v1090
    %v1099 = vmul.f32 %v1085, %v1090
    %1100 = vadd.xlane.f32.xlu0 %v1092
    %v1101 = vpop.xlane.xlu0 %1100
    %1102 = vadd.xlane.f32.xlu0 %v1093
    %v1103 = vpop.xlane.xlu0 %1102
    %1104 = vadd.xlane.f32.xlu0 %v1094
    %v1105 = vpop.xlane.xlu0 %1104
    %1106 = vadd.xlane.f32.xlu0 %v1095
    %v1107 = vpop.xlane.xlu0 %1106
    %1108 = vadd.xlane.f32.xlu0 %v1096
    %v1109 = vpop.xlane.xlu0 %1108
    %1110 = vadd.xlane.f32.xlu0 %v1097
    %v1111 = vpop.xlane.xlu0 %1110
    %1112 = vadd.xlane.f32.xlu0 %v1098
    %v1113 = vpop.xlane.xlu0 %1112
    %1114 = vadd.xlane.f32.xlu0 %v1099
    %v1115 = vpop.xlane.xlu0 %1114
    %v1124 = vlaneseq
    %v1125 = vand.u32 %v1124, 127
    %v1126 = vlaneseq
    %v1127 = vshrl.u32 %v1126, 7
    %v1128 = vsub.s32 %v1125, %v1127
    %v1129 = vrot.slane %v1101, %v1128
    %v1130 = vlaneseq
    %v1131 = vshrl.u32 %v1130, 7
    %v1132 = vsub.s32 %v1125, %v1131
    %v1133 = vrot.slane %v1103, %v1132
    %v1134 = vlaneseq
    %v1135 = vshrl.u32 %v1134, 7
    %v1136 = vsub.s32 %v1125, %v1135
    %v1137 = vrot.slane %v1105, %v1136
    %v1138 = vlaneseq
    %v1139 = vshrl.u32 %v1138, 7
    %v1140 = vsub.s32 %v1125, %v1139
    %v1141 = vrot.slane %v1107, %v1140
    %v1142 = vlaneseq
    %v1143 = vshrl.u32 %v1142, 7
    %v1144 = vsub.s32 %v1125, %v1143
    %v1145 = vrot.slane %v1109, %v1144
    %v1146 = vlaneseq
    %v1147 = vshrl.u32 %v1146, 7
    %v1148 = vsub.s32 %v1125, %v1147
    %v1149 = vrot.slane %v1111, %v1148
    %v1150 = vlaneseq
    %v1151 = vshrl.u32 %v1150, 7
    %v1152 = vsub.s32 %v1125, %v1151
    %v1153 = vrot.slane %v1113, %v1152
    %v1154 = vlaneseq
    %v1155 = vshrl.u32 %v1154, 7
    %v1156 = vsub.s32 %v1125, %v1155
    %v1157 = vrot.slane %v1115, %v1156
    %vm1158 = vcmask 1041409
    %v1159 = vsel %vm1158, %v1133, %v1129
    %vm1160 = vcmask 1042434
    %v1161 = vsel %vm1160, %v1137, %v1159
    %vm1162 = vcmask 1043459
    %v1163 = vsel %vm1162, %v1141, %v1161
    %vm1164 = vcmask 1044484
    %v1165 = vsel %vm1164, %v1145, %v1163
    %vm1166 = vcmask 1045509
    %v1167 = vsel %vm1166, %v1149, %v1165
    %vm1168 = vcmask 1046534
    %v1169 = vsel %vm1168, %v1153, %v1167
    %vm1170 = vcmask 1047559
    %v1171 = vsel %vm1170, %v1157, %v1169
    %vm1173 = vcmask 64512
    %v1174 = vsel %vm1173, %v1171, -inf
    %1175 = vmax.xlane.f32.xlu0 %v1174
    %v1176 = vpop.xlane.xlu0 %1175
    %v1178 = vlaneseq
    %v1179 = vshrl.u32 %v1178, 7
    %v1180 = vsub.s32 0, %v1179
    %v1181 = vrot.slane %v1176, %v1180
    %v1182 = vlaneseq
    %v1183 = vshrl.u32 %v1182, 7
    %v1184 = vsub.s32 1, %v1183
    %v1185 = vrot.slane %v1176, %v1184
    %v1186 = vlaneseq
    %v1187 = vshrl.u32 %v1186, 7
    %v1188 = vsub.s32 2, %v1187
    %v1189 = vrot.slane %v1176, %v1188
    %v1190 = vlaneseq
    %v1191 = vshrl.u32 %v1190, 7
    %v1192 = vsub.s32 3, %v1191
    %v1193 = vrot.slane %v1176, %v1192
    %v1194 = vlaneseq
    %v1195 = vshrl.u32 %v1194, 7
    %v1196 = vsub.s32 4, %v1195
    %v1197 = vrot.slane %v1176, %v1196
    %v1198 = vlaneseq
    %v1199 = vshrl.u32 %v1198, 7
    %v1200 = vsub.s32 5, %v1199
    %v1201 = vrot.slane %v1176, %v1200
    %v1202 = vlaneseq
    %v1203 = vshrl.u32 %v1202, 7
    %v1204 = vsub.s32 6, %v1203
    %v1205 = vrot.slane %v1176, %v1204
    %v1206 = vlaneseq
    %v1207 = vshrl.u32 %v1206, 7
    %v1208 = vsub.s32 7, %v1207
    %v1209 = vrot.slane %v1176, %v1208
    %v1218 = vsub.f32 %v1101, %v1181
    %v1219 = vsub.f32 %v1103, %v1185
    %v1220 = vsub.f32 %v1105, %v1189
    %v1221 = vsub.f32 %v1107, %v1193
    %v1222 = vsub.f32 %v1109, %v1197
    %v1223 = vsub.f32 %v1111, %v1201
    %v1224 = vsub.f32 %v1113, %v1205
    %v1225 = vsub.f32 %v1115, %v1209
    %v1226 = vmul.f32 %v1218, 1.442695
    %v1227 = vpow.pop %v1226
    %v1228 = vmul.f32 %v1219, 1.442695
    %v1229 = vpow.pop %v1228
    %v1230 = vmul.f32 %v1220, 1.442695
    %v1231 = vpow.pop %v1230
    %v1232 = vmul.f32 %v1221, 1.442695
    %v1233 = vpow.pop %v1232
    %v1234 = vmul.f32 %v1222, 1.442695
    %v1235 = vpow.pop %v1234
    %v1236 = vmul.f32 %v1223, 1.442695
    %v1237 = vpow.pop %v1236
    %v1238 = vmul.f32 %v1224, 1.442695
    %v1239 = vpow.pop %v1238
    %v1240 = vmul.f32 %v1225, 1.442695
    %v1241 = vpow.pop %v1240
    %1250 = vset.pattern.permute.xlu0 0
    %1251 = vperm.xlu0 %1250, %v1227
    %v1252 = vpop.permute.xlu0 %1251
    %1253 = vset.pattern.permute.xlu0 0
    %1254 = vperm.xlu0 %1253, %v1229
    %v1255 = vpop.permute.xlu0 %1254
    %1256 = vset.pattern.permute.xlu0 0
    %1257 = vperm.xlu0 %1256, %v1231
    %v1258 = vpop.permute.xlu0 %1257
    %1259 = vset.pattern.permute.xlu0 0
    %1260 = vperm.xlu0 %1259, %v1233
    %v1261 = vpop.permute.xlu0 %1260
    %1262 = vset.pattern.permute.xlu0 0
    %1263 = vperm.xlu0 %1262, %v1235
    %v1264 = vpop.permute.xlu0 %1263
    %1265 = vset.pattern.permute.xlu0 0
    %1266 = vperm.xlu0 %1265, %v1237
    %v1267 = vpop.permute.xlu0 %1266
    %1268 = vset.pattern.permute.xlu0 0
    %1269 = vperm.xlu0 %1268, %v1239
    %v1270 = vpop.permute.xlu0 %1269
    %1271 = vset.pattern.permute.xlu0 0
    %1272 = vperm.xlu0 %1271, %v1241
    %v1273 = vpop.permute.xlu0 %1272
    %v1274 = vlaneseq
    %v1275 = vshrl.u32 %v1274, 7
    %v1276 = vsub.s32 %v1125, %v1275
    %v1277 = vrot.slane %v1252, %v1276
    %v1278 = vlaneseq
    %v1279 = vshrl.u32 %v1278, 7
    %v1280 = vsub.s32 %v1125, %v1279
    %v1281 = vrot.slane %v1255, %v1280
    %v1282 = vlaneseq
    %v1283 = vshrl.u32 %v1282, 7
    %v1284 = vsub.s32 %v1125, %v1283
    %v1285 = vrot.slane %v1258, %v1284
    %v1286 = vlaneseq
    %v1287 = vshrl.u32 %v1286, 7
    %v1288 = vsub.s32 %v1125, %v1287
    %v1289 = vrot.slane %v1261, %v1288
    %v1290 = vlaneseq
    %v1291 = vshrl.u32 %v1290, 7
    %v1292 = vsub.s32 %v1125, %v1291
    %v1293 = vrot.slane %v1264, %v1292
    %v1294 = vlaneseq
    %v1295 = vshrl.u32 %v1294, 7
    %v1296 = vsub.s32 %v1125, %v1295
    %v1297 = vrot.slane %v1267, %v1296
    %v1298 = vlaneseq
    %v1299 = vshrl.u32 %v1298, 7
    %v1300 = vsub.s32 %v1125, %v1299
    %v1301 = vrot.slane %v1270, %v1300
    %v1302 = vlaneseq
    %v1303 = vshrl.u32 %v1302, 7
    %v1304 = vsub.s32 %v1125, %v1303
    %v1305 = vrot.slane %v1273, %v1304
    %v1306 = vsel %vm1158, %v1281, %v1277
    %v1307 = vsel %vm1160, %v1285, %v1306
    %v1308 = vsel %vm1162, %v1289, %v1307
    %v1309 = vsel %vm1164, %v1293, %v1308
    %v1310 = vsel %vm1166, %v1297, %v1309
    %v1311 = vsel %vm1168, %v1301, %v1310
    %v1312 = vsel %vm1170, %v1305, %v1311
    %v1314 = vsel %vm1173, %v1312, 0.0
    %1315 = vadd.xlane.f32.xlu0 %v1314
    %v1316 = vpop.xlane.xlu0 %1315
    %v1317 = vrcp.pop %v1316
    %v1319 = vlaneseq
    %v1320 = vshrl.u32 %v1319, 7
    %v1321 = vsub.s32 0, %v1320
    %v1322 = vrot.slane %v1317, %v1321
    %v1323 = vlaneseq
    %v1324 = vshrl.u32 %v1323, 7
    %v1325 = vsub.s32 1, %v1324
    %v1326 = vrot.slane %v1317, %v1325
    %v1327 = vlaneseq
    %v1328 = vshrl.u32 %v1327, 7
    %v1329 = vsub.s32 2, %v1328
    %v1330 = vrot.slane %v1317, %v1329
    %v1331 = vlaneseq
    %v1332 = vshrl.u32 %v1331, 7
    %v1333 = vsub.s32 3, %v1332
    %v1334 = vrot.slane %v1317, %v1333
    %v1335 = vlaneseq
    %v1336 = vshrl.u32 %v1335, 7
    %v1337 = vsub.s32 4, %v1336
    %v1338 = vrot.slane %v1317, %v1337
    %v1339 = vlaneseq
    %v1340 = vshrl.u32 %v1339, 7
    %v1341 = vsub.s32 5, %v1340
    %v1342 = vrot.slane %v1317, %v1341
    %v1343 = vlaneseq
    %v1344 = vshrl.u32 %v1343, 7
    %v1345 = vsub.s32 6, %v1344
    %v1346 = vrot.slane %v1317, %v1345
    %v1347 = vlaneseq
    %v1348 = vshrl.u32 %v1347, 7
    %v1349 = vsub.s32 7, %v1348
    %v1350 = vrot.slane %v1317, %v1349
    %v1359 = vmul.f32 %v1227, %v1322
    %v1360 = vmul.f32 %v1229, %v1326
    %v1361 = vmul.f32 %v1231, %v1330
    %v1362 = vmul.f32 %v1233, %v1334
    %v1363 = vmul.f32 %v1235, %v1338
    %v1364 = vmul.f32 %v1237, %v1342
    %v1365 = vmul.f32 %v1239, %v1346
    %v1366 = vmul.f32 %v1241, %v1350
    %1368 = vset.pattern.permute.xlu0 0
    %1369 = vperm.xlu0 %1368, %v1359
    %v1370 = vpop.permute.xlu0 %1369
    %1373 = vset.pattern.permute.xlu0 0
    %1374 = vperm.xlu0 %1373, %v1360
    %v1375 = vpop.permute.xlu0 %1374
    %1378 = vset.pattern.permute.xlu0 0
    %1379 = vperm.xlu0 %1378, %v1361
    %v1380 = vpop.permute.xlu0 %1379
    %1383 = vset.pattern.permute.xlu0 0
    %1384 = vperm.xlu0 %1383, %v1362
    %v1385 = vpop.permute.xlu0 %1384
    %1388 = vset.pattern.permute.xlu0 0
    %1389 = vperm.xlu0 %1388, %v1363
    %v1390 = vpop.permute.xlu0 %1389
    %1393 = vset.pattern.permute.xlu0 0
    %1394 = vperm.xlu0 %1393, %v1364
    %v1395 = vpop.permute.xlu0 %1394
    %1398 = vset.pattern.permute.xlu0 0
    %1399 = vperm.xlu0 %1398, %v1365
    %v1400 = vpop.permute.xlu0 %1399
    %1403 = vset.pattern.permute.xlu0 0
    %1404 = vperm.xlu0 %1403, %v1366
    %v1405 = vpop.permute.xlu0 %1404
    %v1407 = vmul.f32 %v1370, %v925
    %v1408 = vmul.f32 %v1375, %v929
    %v1409 = vmul.f32 %v1380, %v935
    %v1410 = vmul.f32 %v1385, %v939
    %v1411 = vmul.f32 %v1390, %v945
    %v1412 = vmul.f32 %v1395, %v949
    %v1413 = vmul.f32 %v1400, %v955
    %v1414 = vmul.f32 %v1405, %v959
    %v1415 = vrot.slane %v1407, 4
    %v1416 = vadd.f32 %v1407, %v1415
    %v1417 = vrot.slane %v1416, 2
    %v1418 = vadd.f32 %v1416, %v1417
    %v1419 = vrot.slane %v1418, 1
    %v1420 = vadd.f32 %v1418, %v1419
    %v1421 = vrot.slane %v1408, 4
    %v1422 = vadd.f32 %v1408, %v1421
    %v1423 = vrot.slane %v1422, 2
    %v1424 = vadd.f32 %v1422, %v1423
    %v1425 = vrot.slane %v1424, 1
    %v1426 = vadd.f32 %v1424, %v1425
    %v1427 = vrot.slane %v1409, 4
    %v1428 = vadd.f32 %v1409, %v1427
    %v1429 = vrot.slane %v1428, 2
    %v1430 = vadd.f32 %v1428, %v1429
    %v1431 = vrot.slane %v1430, 1
    %v1432 = vadd.f32 %v1430, %v1431
    %v1433 = vrot.slane %v1410, 4
    %v1434 = vadd.f32 %v1410, %v1433
    %v1435 = vrot.slane %v1434, 2
    %v1436 = vadd.f32 %v1434, %v1435
    %v1437 = vrot.slane %v1436, 1
    %v1438 = vadd.f32 %v1436, %v1437
    %v1439 = vrot.slane %v1411, 4
    %v1440 = vadd.f32 %v1411, %v1439
    %v1441 = vrot.slane %v1440, 2
    %v1442 = vadd.f32 %v1440, %v1441
    %v1443 = vrot.slane %v1442, 1
    %v1444 = vadd.f32 %v1442, %v1443
    %v1445 = vrot.slane %v1412, 4
    %v1446 = vadd.f32 %v1412, %v1445
    %v1447 = vrot.slane %v1446, 2
    %v1448 = vadd.f32 %v1446, %v1447
    %v1449 = vrot.slane %v1448, 1
    %v1450 = vadd.f32 %v1448, %v1449
    %v1451 = vrot.slane %v1413, 4
    %v1452 = vadd.f32 %v1413, %v1451
    %v1453 = vrot.slane %v1452, 2
    %v1454 = vadd.f32 %v1452, %v1453
    %v1455 = vrot.slane %v1454, 1
    %v1456 = vadd.f32 %v1454, %v1455
    %v1457 = vrot.slane %v1414, 4
    %v1458 = vadd.f32 %v1414, %v1457
    %v1459 = vrot.slane %v1458, 2
    %v1460 = vadd.f32 %v1458, %v1459
    %v1461 = vrot.slane %v1460, 1
    %v1462 = vadd.f32 %v1460, %v1461
    %v1471 = vsel %vm1158, %v1426, %v1420
    %v1472 = vsel %vm1160, %v1432, %v1471
    %v1473 = vsel %vm1162, %v1438, %v1472
    %v1474 = vsel %vm1164, %v1444, %v1473
    %v1475 = vsel %vm1166, %v1450, %v1474
    %v1476 = vsel %vm1168, %v1456, %v1475
    %v1477 = vsel %vm1170, %v1462, %v1476
    %v1479 = vpack.c.bf16 %v788, %v788
    %v1480 = vpack.c.bf16 %v1477, %v1477
    %v1481 = vld [vmem:[%s5] sm:$0xf]
    %v1482 = vld [vmem:[%s5 + $0x4] sm:$0xf]
    %v1483 = vld [vmem:[%s5 + $0x8] sm:$0xf]
    %v1484 = vld [vmem:[%s5 + $0xc] sm:$0xf]
    %v1485 = vld [vmem:[%s5 + $0x10] sm:$0xf]
    %v1486 = vld [vmem:[%s5 + $0x14] sm:$0xf]
    %v1487 = vld [vmem:[%s5 + $0x18] sm:$0xf]
    %v1488 = vld [vmem:[%s5 + $0x1c] sm:$0xf]
    %v1489 = vld [vmem:[%s5 + $0x20] sm:$0xf]
    %v1490 = vld [vmem:[%s5 + $0x24] sm:$0xf]
    %v1491 = vld [vmem:[%s5 + $0x28] sm:$0xf]
    %v1492 = vld [vmem:[%s5 + $0x2c] sm:$0xf]
    %v1493 = vld [vmem:[%s5 + $0x30] sm:$0xf]
    %v1494 = vld [vmem:[%s5 + $0x34] sm:$0xf]
    %v1495 = vld [vmem:[%s5 + $0x38] sm:$0xf]
    %v1496 = vld [vmem:[%s5 + $0x3c] sm:$0xf]
    %v1497 = vld [vmem:[%s5 + $0x40] sm:$0xf]
    %v1498 = vld [vmem:[%s5 + $0x44] sm:$0xf]
    %v1499 = vld [vmem:[%s5 + $0x48] sm:$0xf]
    %v1500 = vld [vmem:[%s5 + $0x4c] sm:$0xf]
    %v1501 = vld [vmem:[%s5 + $0x50] sm:$0xf]
    %v1502 = vld [vmem:[%s5 + $0x54] sm:$0xf]
    %v1503 = vld [vmem:[%s5 + $0x58] sm:$0xf]
    %v1504 = vld [vmem:[%s5 + $0x5c] sm:$0xf]
    %v1505 = vld [vmem:[%s5 + $0x60] sm:$0xf]
    %v1506 = vld [vmem:[%s5 + $0x64] sm:$0xf]
    %v1507 = vld [vmem:[%s5 + $0x68] sm:$0xf]
    %v1508 = vld [vmem:[%s5 + $0x6c] sm:$0xf]
    %v1509 = vld [vmem:[%s5 + $0x70] sm:$0xf]
    %v1510 = vld [vmem:[%s5 + $0x74] sm:$0xf]
    %v1511 = vld [vmem:[%s5 + $0x78] sm:$0xf]
    %v1512 = vld [vmem:[%s5 + $0x7c] sm:$0xf]
    %v1514 = vlaneseq
    %v1515 = vshrl.u32 %v1514, 7
    %v1516 = vsub.s32 0, %v1515
    %v1517 = vrot.slane %v965, %v1516
    %v1551 = vunpack.c.l.b16 %v1481
    %v1552 = vunpack.c.l.b16 %v1482
    %v1553 = vunpack.c.l.b16 %v1483
    %v1554 = vunpack.c.l.b16 %v1484
    %v1555 = vunpack.c.l.b16 %v1485
    %v1556 = vunpack.c.l.b16 %v1486
    %v1557 = vunpack.c.l.b16 %v1487
    %v1558 = vunpack.c.l.b16 %v1488
    %v1559 = vunpack.c.l.b16 %v1489
    %v1560 = vunpack.c.l.b16 %v1490
    %v1561 = vunpack.c.l.b16 %v1491
    %v1562 = vunpack.c.l.b16 %v1492
    %v1563 = vunpack.c.l.b16 %v1493
    %v1564 = vunpack.c.l.b16 %v1494
    %v1565 = vunpack.c.l.b16 %v1495
    %v1566 = vunpack.c.l.b16 %v1496
    %v1567 = vunpack.c.l.b16 %v1497
    %v1568 = vunpack.c.l.b16 %v1498
    %v1569 = vunpack.c.l.b16 %v1499
    %v1570 = vunpack.c.l.b16 %v1500
    %v1571 = vunpack.c.l.b16 %v1501
    %v1572 = vunpack.c.l.b16 %v1502
    %v1573 = vunpack.c.l.b16 %v1503
    %v1574 = vunpack.c.l.b16 %v1504
    %v1575 = vunpack.c.l.b16 %v1505
    %v1576 = vunpack.c.l.b16 %v1506
    %v1577 = vunpack.c.l.b16 %v1507
    %v1578 = vunpack.c.l.b16 %v1508
    %v1579 = vunpack.c.l.b16 %v1509
    %v1580 = vunpack.c.l.b16 %v1510
    %v1581 = vunpack.c.l.b16 %v1511
    %v1582 = vunpack.c.l.b16 %v1512
    %v1583 = vpack.c.b16 %v1552, %v1551
    %v1584 = vpack.c.b16 %v1554, %v1553
    %v1585 = vpack.c.b16 %v1556, %v1555
    %v1586 = vpack.c.b16 %v1558, %v1557
    %v1587 = vpack.c.b16 %v1560, %v1559
    %v1588 = vpack.c.b16 %v1562, %v1561
    %v1589 = vpack.c.b16 %v1564, %v1563
    %v1590 = vpack.c.b16 %v1566, %v1565
    %v1591 = vpack.c.b16 %v1568, %v1567
    %v1592 = vpack.c.b16 %v1570, %v1569
    %v1593 = vpack.c.b16 %v1572, %v1571
    %v1594 = vpack.c.b16 %v1574, %v1573
    %v1595 = vpack.c.b16 %v1576, %v1575
    %v1596 = vpack.c.b16 %v1578, %v1577
    %v1597 = vpack.c.b16 %v1580, %v1579
    %v1598 = vpack.c.b16 %v1582, %v1581
    %1615 = vmatprep.subr.bf16.mxu0 0
    %1616 = vmatpush1.bf16.msra.mxu0 %v1583
    %1617 = vmatprep.subr.bf16.mxu0 0
    %1618 = vmatpush1.bf16.msra.mxu0 %v1584
    %1619 = vmatprep.subr.bf16.mxu0 0
    %1620 = vmatpush1.bf16.msra.mxu0 %v1585
    %1621 = vmatprep.subr.bf16.mxu0 0
    %1622 = vmatpush1.bf16.msra.mxu0 %v1586
    %1623 = vmatprep.subr.bf16.mxu0 0
    %1624 = vmatpush1.bf16.msra.mxu0 %v1587
    %1625 = vmatprep.subr.bf16.mxu0 0
    %1626 = vmatpush1.bf16.msra.mxu0 %v1588
    %1627 = vmatprep.subr.bf16.mxu0 0
    %1628 = vmatpush1.bf16.msra.mxu0 %v1589
    %1629 = vmatprep.subr.bf16.mxu0 0
    %1630 = vmatpush1.bf16.msra.mxu0 %v1590
    %1631 = vmatprep.subr.bf16.mxu0 0
    %1632 = vmatpush1.bf16.msra.mxu0 %v1591
    %1633 = vmatprep.subr.bf16.mxu0 0
    %1634 = vmatpush1.bf16.msra.mxu0 %v1592
    %1635 = vmatprep.subr.bf16.mxu0 0
    %1636 = vmatpush1.bf16.msra.mxu0 %v1593
    %1637 = vmatprep.subr.bf16.mxu0 0
    %1638 = vmatpush1.bf16.msra.mxu0 %v1594
    %1639 = vmatprep.subr.bf16.mxu0 0
    %1640 = vmatpush1.bf16.msra.mxu0 %v1595
    %1641 = vmatprep.subr.bf16.mxu0 0
    %1642 = vmatpush1.bf16.msra.mxu0 %v1596
    %1643 = vmatprep.subr.bf16.mxu0 0
    %1644 = vmatpush1.bf16.msra.mxu0 %v1597
    %1645 = vmatprep.subr.bf16.mxu0 0
    %1646 = vmatpush1.bf16.msra.mxu0 %v1598
    %1647 = vmatprep.mubr.bf16.mxu0 %v1480
    %1648 = vmatmul.mubr.bf16.gmra.mrb[0].mxu0 %v1479
    %v1649 = vpop.f32.mrb[0].mxu0
    %v1650 = vadd.f32 %v1517, %v1649
    %v1651 = vpop.f32.mrb[0].mxu0
    %v1652 = vpop.f32.mrb[0].mxu0
    %v1653 = vpop.f32.mrb[0].mxu0
    %1654 = vdwg.mxu0
    %v1655 = vlaneseq
    %v1656 = vshrl.u32 %v1655, 7
    %v1657 = vsub.s32 %v1125, %v1656
    %v1658 = vrot.slane %v1370, %v1657
    %v1659 = vlaneseq
    %v1660 = vshrl.u32 %v1659, 7
    %v1661 = vsub.s32 %v1125, %v1660
    %v1662 = vrot.slane %v1375, %v1661
    %v1663 = vlaneseq
    %v1664 = vshrl.u32 %v1663, 7
    %v1665 = vsub.s32 %v1125, %v1664
    %v1666 = vrot.slane %v1380, %v1665
    %v1667 = vlaneseq
    %v1668 = vshrl.u32 %v1667, 7
    %v1669 = vsub.s32 %v1125, %v1668
    %v1670 = vrot.slane %v1385, %v1669
    %v1671 = vlaneseq
    %v1672 = vshrl.u32 %v1671, 7
    %v1673 = vsub.s32 %v1125, %v1672
    %v1674 = vrot.slane %v1390, %v1673
    %v1675 = vlaneseq
    %v1676 = vshrl.u32 %v1675, 7
    %v1677 = vsub.s32 %v1125, %v1676
    %v1678 = vrot.slane %v1395, %v1677
    %v1679 = vlaneseq
    %v1680 = vshrl.u32 %v1679, 7
    %v1681 = vsub.s32 %v1125, %v1680
    %v1682 = vrot.slane %v1400, %v1681
    %v1683 = vlaneseq
    %v1684 = vshrl.u32 %v1683, 7
    %v1685 = vsub.s32 %v1125, %v1684
    %v1686 = vrot.slane %v1405, %v1685
    %v1687 = vsel %vm1158, %v1662, %v1658
    %v1688 = vsel %vm1160, %v1666, %v1687
    %v1689 = vsel %vm1162, %v1670, %v1688
    %v1690 = vsel %vm1164, %v1674, %v1689
    %v1691 = vsel %vm1166, %v1678, %v1690
    %v1692 = vsel %vm1168, %v1682, %v1691
    %v1693 = vsel %vm1170, %v1686, %v1692
    %v1695 = vsel %vm1173, %v1693, 0.0
    %1696 = vst [vmem:[%s9] sm:$0xff] %v1650
    %1697 = vst [vmem:[%s9 + $0x8] sm:$0xff] %v788
    %1698 = vst [vmem:[%s9 + $0x10] sm:$0xff] %v786
    %1699 = vst [vmem:[%s9 + $0x18] sm:$0xff] %v1695
    // Predicated region
    $region58: #{decoder_with_attention.1} parent=1 // pred_check
      _
    $region59: #{decoder_with_attention.1} parent=1 // pred_check_branch
      %1701 = sbr.rel (0) target = $region61
    $region60: #{decoder_with_attention.1} parent=1 // pred_region
      _
    $region61: #{decoder_with_attention.1} parent=1 // pred_fallthru
      _
    // Predicated region
    $region62: #{decoder_with_attention.1} parent=1 // pred_check
      _
    $region63: #{decoder_with_attention.1} parent=1 // pred_check_branch
      %1703 = sbr.rel (0) target = $region65
    $region64: #{decoder_with_attention.1} parent=1 // pred_region
      _
    $region65: #{decoder_with_attention.1} parent=1 // pred_fallthru
      _
    %1704 = vsyncpa [#allocation3], 1
    %1705 = vsyncpa [#allocation5], 1
    %1706 = vsyncpa [#allocation8], 1

</llo_original>
